<compile_context>
chip_gen: v6e
topology: v6e:2x2x1
jax: 0.10.0
libtpu: 0.0.40
codegen_flags: <defaults>
</compile_context>

<pallas_src>
import math

import jax
import jax.numpy as jnp
from jax.experimental import pallas as pl
from jax.experimental.pallas import tpu as pltpu

# ---- small synthetic config ----
B, S, D, H, F = 2, 8, 32, 4, 64     # batch, seq, d_model, heads, d_ff
DK = D // H
N = B * S                            # batch folded onto the token (sublane) axis
EPS = 1e-5                           # nn.LayerNorm default
NEG = -1e9

# packed-parameter slab layout
W_ROWS = 3 * D + F                   # 160 rows: qkv(32) | wo(32) | w1(32) | w2(64)
B_ROWS = 16                          # bias slab rows (10 used, padded to 16)
LANES = 128


def _layer_norm(x, gamma, beta):
    mu = jnp.mean(x, axis=-1, keepdims=True)
    var = jnp.mean((x - mu) ** 2, axis=-1, keepdims=True)
    return (x - mu) * jax.lax.rsqrt(var + EPS) * gamma + beta


def _to_heads(t):
    """(N, H, DK) -> (H, N, DK) with a lane-layout-aware relayout if available."""
    if hasattr(pltpu, "einshape"):
        return pltpu.einshape("shd->hsd", t)
    return jnp.transpose(t, (1, 0, 2))


def _from_heads(t):
    """(H, N, DK) -> (N, H, DK)."""
    if hasattr(pltpu, "einshape"):
        return pltpu.einshape("hsd->shd", t)
    return jnp.transpose(t, (1, 0, 2))


def encoder_layer_kernel(x_ref, mbias_ref, w_ref, b_ref, out_ref):
    n = out_ref.shape[0]                 # B*S token rows
    x = x_ref[...]                       # f32: (n, D) fast path / (3n, D) general
    xb = x.astype(jnp.bfloat16)          # bf16 MXU operands

    # ---- fused Q/K/V projection ----
    wqkv = w_ref[0:D, 0:3 * D]           # bf16  [wq | wk | wv]
    proj = jnp.dot(xb, wqkv, preferred_element_type=jnp.float32)

    if x_ref.shape[0] == n:
        # self-attention fast path: (n,D)x(D,3D), nothing computed then discarded
        x_q = x
        q = proj[:, 0:D] + b_ref[0:1, 0:D]
        k = proj[:, D:2 * D] + b_ref[1:2, 0:D]
        v = proj[:, 2 * D:3 * D] + b_ref[2:3, 0:D]
    else:
        # general (cross-attention) path: q/k/v stacked on the sublane axis
        x_q = x[0:n]
        q = proj[0:n, 0:D] + b_ref[0:1, 0:D]
        k = proj[n:2 * n, D:2 * D] + b_ref[1:2, 0:D]
        v = proj[2 * n:3 * n, 2 * D:3 * D] + b_ref[2:3, 0:D]

    # ---- all heads at once: (H, n, DK), leading-batch einsums ----
    qh = _to_heads(q.astype(jnp.bfloat16).reshape(n, H, DK))
    kh = _to_heads(k.astype(jnp.bfloat16).reshape(n, H, DK))
    vh = _to_heads(v.astype(jnp.bfloat16).reshape(n, H, DK))

    scale = 1.0 / math.sqrt(DK)
    scores = jnp.einsum("hqd,hkd->hqk", qh, kh,
                        preferred_element_type=jnp.float32) * scale
    # additive bias: user mask inside each batch + block-diagonal cross-batch mask
    # (-1e9 -> exp underflows to 0, so folding B onto the token axis is exact for
    # any row with at least one unmasked key; fully-masked rows become uniform,
    # matching the -1e9 scheme of the reference).
    scores = scores + mbias_ref[...][None, :, :]
    m = jnp.max(scores, axis=-1, keepdims=True)
    p = jnp.exp(scores - m)
    denom = jnp.sum(p, axis=-1, keepdims=True)
    p = p * pl.reciprocal(denom, approx=True)          # EUP vrcp, otherwise-idle slot
    att = jnp.einsum("hqk,hkd->hqd", p.astype(jnp.bfloat16), vh,
                     preferred_element_type=jnp.float32)           # (H, n, DK)
    att = _from_heads(att).reshape(n, D)                            # (n, D)

    # ---- output projection + residual + LayerNorm (stats in f32) ----
    wo = w_ref[D:2 * D, 0:D]
    att = jnp.dot(att.astype(jnp.bfloat16), wo,
                  preferred_element_type=jnp.float32) + b_ref[3:4, 0:D]
    # dropout is identity in eval mode
    y = _layer_norm(x_q + att, b_ref[4:5, 0:D], b_ref[5:6, 0:D])

    # ---- position-wise feed-forward + residual + LayerNorm ----
    w1 = w_ref[2 * D:3 * D, 0:F]
    w2 = w_ref[3 * D:3 * D + F, 0:D]
    h1 = jnp.maximum(
        jnp.dot(y.astype(jnp.bfloat16), w1,
                preferred_element_type=jnp.float32) + b_ref[6:7, 0:F], 0.0)
    y2 = jnp.dot(h1.astype(jnp.bfloat16), w2,
                 preferred_element_type=jnp.float32) + b_ref[7:8, 0:D]
    z = _layer_norm(y + y2, b_ref[8:9, 0:D], b_ref[9:10, 0:D])

    # direct (n, D) store — tiny output, avoid any lane-flatten relayout
    out_ref[...] = z.astype(out_ref.dtype)


def pack_params(p):
    """Pack the 16 per-layer tensors into 2 slabs (weights bf16, biases f32)."""
    w_slab = jnp.zeros((W_ROWS, LANES), jnp.float32)
    w_slab = w_slab.at[0:D, 0:3 * D].set(
        jnp.concatenate([p["wq"], p["wk"], p["wv"]], axis=1))
    w_slab = w_slab.at[D:2 * D, 0:D].set(p["wo"])
    w_slab = w_slab.at[2 * D:3 * D, 0:F].set(p["w1"])
    w_slab = w_slab.at[3 * D:3 * D + F, 0:D].set(p["w2"])

    b_slab = jnp.zeros((B_ROWS, LANES), jnp.float32)
    rows = [("bq", D), ("bk", D), ("bv", D), ("bo", D), ("g1", D), ("be1", D),
            ("b1", F), ("b2", D), ("g2", D), ("be2", D)]
    for i, (name, width) in enumerate(rows):
        b_slab = b_slab.at[i, 0:width].set(p[name].reshape(-1))
    return w_slab.astype(jnp.bfloat16), b_slab


def build_mask_bias(attention_mask):
    """(B,S,S) mask (1 = masked) -> (B*S, B*S) additive bias for the folded batch:
    within-batch blocks carry the user mask, cross-batch blocks are fully masked.
    O((B*S)^2) floats — fine at this size; block the KV axis if S is scaled up."""
    per_batch = jnp.where(attention_mask > 0, NEG, 0.0).astype(jnp.float32)  # (B,S,S)
    same = jnp.eye(B, dtype=bool)[:, None, :, None]                          # (B,1,B,1)
    full = jnp.where(same, per_batch[:, :, None, :], jnp.float32(NEG))       # (B,S,B,S)
    return full.reshape(B * S, B * S)


def encoder_layer(queries, keys, values, attention_mask, params):
    w_slab, b_slab = pack_params(params)
    mbias = build_mask_bias(attention_mask)

    if queries is keys and queries is values:
        x_in = queries.reshape(N, D)                                # fast path
    else:
        x_in = jnp.concatenate([queries.reshape(N, D), keys.reshape(N, D),
                                values.reshape(N, D)], axis=0)      # general path
    rows = x_in.shape[0]

    grid_spec = pltpu.PrefetchScalarGridSpec(
        num_scalar_prefetch=0,
        grid=(1,),                       # batch folded onto sublanes -> single step
        in_specs=[
            pl.BlockSpec((rows, D), lambda i: (0, 0)),              # activations (f32)
            pl.BlockSpec((N, N), lambda i: (0, 0)),                 # mask bias
            pl.BlockSpec((W_ROWS, LANES), lambda i: (0, 0)),        # weight slab (bf16)
            pl.BlockSpec((B_ROWS, LANES), lambda i: (0, 0)),        # bias slab (f32)
        ],
        out_specs=pl.BlockSpec((N, D), lambda i: (0, 0)),
    )
    # TODO(synk): on v7x, optionally re-split the batch across the two TensorCores
    # (grid=(B,), dimension_semantics=("parallel",)) if profiling shows the 2-TC
    # split amortizes its prologue at larger shapes.
    out = pl.pallas_call(
        encoder_layer_kernel,
        out_shape=jax.ShapeDtypeStruct((N, D), jnp.float32),
        grid_spec=grid_spec,
        compiler_params=pltpu.CompilerParams(
            dimension_semantics=("arbitrary",)),
    )(x_in, mbias, w_slab, b_slab)
    return out.reshape(B, S, D)


@jax.jit
def encoder_layer_self(x, attention_mask, params):
    # same tracer for q/k/v -> self-attention fast path inside encoder_layer
    return encoder_layer(x, x, x, attention_mask, params)


@jax.jit
def encoder_layer_cross(queries, keys, values, attention_mask, params):
    return encoder_layer(queries, keys, values, attention_mask, params)


def make_params(key):
    ks = jax.random.split(key, 8)
    s = 0.05
    return {
        "wq": s * jax.random.normal(ks[0], (D, D), jnp.float32),
        "bq": jnp.zeros((1, D), jnp.float32),
        "wk": s * jax.random.normal(ks[1], (D, D), jnp.float32),
        "bk": jnp.zeros((1, D), jnp.float32),
        "wv": s * jax.random.normal(ks[2], (D, D), jnp.float32),
        "bv": jnp.zeros((1, D), jnp.float32),
        "wo": s * jax.random.normal(ks[3], (D, D), jnp.float32),
        "bo": 0.01 * jnp.ones((1, D), jnp.float32),
        "g1": jnp.ones((1, D), jnp.float32),
        "be1": jnp.zeros((1, D), jnp.float32),
        "w1": s * jax.random.normal(ks[4], (D, F), jnp.float32),
        "b1": 0.01 * jnp.ones((1, F), jnp.float32),
        "w2": s * jax.random.normal(ks[5], (F, D), jnp.float32),
        "b2": 0.01 * jnp.ones((1, D), jnp.float32),
        "g2": jnp.ones((1, D), jnp.float32),
        "be2": jnp.zeros((1, D), jnp.float32),
    }


def reference(queries, keys, values, attention_mask, p):
    """Pure-JAX f32 reference mirroring the PyTorch forward (eval mode)."""
    def ln(x, g, b):
        mu = jnp.mean(x, axis=-1, keepdims=True)
        var = jnp.mean((x - mu) ** 2, axis=-1, keepdims=True)
        return (x - mu) / jnp.sqrt(var + EPS) * g + b

    q = queries @ p["wq"] + p["bq"]
    k = keys @ p["wk"] + p["bk"]
    v = values @ p["wv"] + p["bv"]
    q = q.reshape(B, S, H, DK).transpose(0, 2, 1, 3)
    k = k.reshape(B, S, H, DK).transpose(0, 2, 1, 3)
    v = v.reshape(B, S, H, DK).transpose(0, 2, 1, 3)
    scores = jnp.einsum("bhqd,bhkd->bhqk", q, k) / math.sqrt(DK)
    scores = jnp.where(attention_mask[:, None, :, :] > 0, -1e9, scores)
    pattn = jax.nn.softmax(scores, axis=-1)
    att = jnp.einsum("bhqk,bhkd->bhqd", pattn, v)
    att = att.transpose(0, 2, 1, 3).reshape(B, S, D)
    att = att @ p["wo"] + p["bo"]
    y = ln(queries + att, p["g1"], p["be1"])
    h1 = jax.nn.relu(y @ p["w1"] + p["b1"])
    y2 = h1 @ p["w2"] + p["b2"]
    return ln(y + y2, p["g2"], p["be2"])


if __name__ == "__main__":
    root = jax.random.PRNGKey(0)
    k_q, k_par, k_k, k_v = jax.random.split(root, 4)

    queries = jax.random.normal(k_q, (B, S, D), jnp.float32)

    # key-padding mask: last 2 positions of batch 1 are masked (1 = masked)
    key_pad = jnp.zeros((B, S), jnp.int32).at[1, -2:].set(1)
    attention_mask = jnp.broadcast_to(key_pad[:, None, :], (B, S, S)).astype(jnp.int32)

    params = make_params(k_par)

    # ---- self-attention fast path (the actual EncoderLayer usage) ----
    out = jax.block_until_ready(encoder_layer_self(queries, attention_mask, params))
    ref = reference(queries, queries, queries, attention_mask, params)
    assert out.shape == (B, S, D)
    # bf16 matmul operands + EUP approximate reciprocal -> ~1e-3 relative error;
    # 1e-2 tolerance vs. the f32 reference.
    assert jnp.allclose(out, ref, atol=1e-2, rtol=1e-2), "self-attention mismatch"

    # ---- general (cross-attention) path ----
    keys_x = jax.random.normal(k_k, (B, S, D), jnp.float32)
    vals_x = jax.random.normal(k_v, (B, S, D), jnp.float32)
    out_x = jax.block_until_ready(
        encoder_layer_cross(queries, keys_x, vals_x, attention_mask, params))
    ref_x = reference(queries, keys_x, vals_x, attention_mask, params)
    assert jnp.allclose(out_x, ref_x, atol=1e-2, rtol=1e-2), "cross-attention mismatch"

    print("KERNEL_OK")
</pallas_src>

<mosaic_0001>
module attributes {stable_mosaic.version = 11 : i64} {
  func.func @encoder_layer_kernel(%arg0: i32, %arg1: memref<16x32xf32, #tpu.memory_space<vmem>>, %arg2: memref<16x16xf32, #tpu.memory_space<vmem>>, %arg3: memref<160x128xbf16, #tpu.memory_space<vmem>>, %arg4: memref<16x128xf32, #tpu.memory_space<vmem>>, %arg5: memref<16x32xf32, #tpu.memory_space<vmem>>) attributes {dimension_semantics = [#tpu.dimension_semantics<arbitrary>], iteration_bounds = array<i64: 1>, scalar_prefetch = 0 : i64, scratch_operands = 0 : i64, tpu.core_type = #tpu.core_type<tc>, window_params = [{pipeline_mode = #tpu.pipeline_mode<synchronous>, transform_indices = @transform_0, window_bounds = array<i64: 16, 32>}, {pipeline_mode = #tpu.pipeline_mode<synchronous>, transform_indices = @transform_1, window_bounds = array<i64: 16, 16>}, {pipeline_mode = #tpu.pipeline_mode<synchronous>, transform_indices = @transform_2, window_bounds = array<i64: 160, 128>}, {pipeline_mode = #tpu.pipeline_mode<synchronous>, transform_indices = @transform_3, window_bounds = array<i64: 16, 128>}, {pipeline_mode = #tpu.pipeline_mode<synchronous>, transform_indices = @transform_4, window_bounds = array<i64: 16, 32>}]} {
    %c0 = arith.constant 0 : index
    %c0_0 = arith.constant 0 : index
    %0 = vector.load %arg1[%c0, %c0_0] : memref<16x32xf32, #tpu.memory_space<vmem>>, vector<16x32xf32>
    %1 = arith.truncf %0 : vector<16x32xf32> to vector<16x32xbf16>
    %c0_1 = arith.constant 0 : index
    %c0_2 = arith.constant 0 : index
    %2 = vector.load %arg3[%c0_1, %c0_2] : memref<160x128xbf16, #tpu.memory_space<vmem>>, vector<32x96xbf16>
    %cst = arith.constant dense<0.000000e+00> : vector<16x96xf32>
    %3 = tpu.matmul %1, %2, %cst {dimension_numbers = #tpu.dot_dimension_numbers<[1], [0], [0], [1], [0, 0, 1, 1], [], []>} : vector<16x32xbf16>, vector<32x96xbf16>, vector<16x96xf32> -> vector<16x96xf32>
    %4 = vector.extract_strided_slice %3 {offsets = [0, 0], sizes = [16, 32], strides = [1, 1]} : vector<16x96xf32> to vector<16x32xf32>
    %c0_3 = arith.constant 0 : index
    %c0_4 = arith.constant 0 : index
    %5 = vector.load %arg4[%c0_3, %c0_4] : memref<16x128xf32, #tpu.memory_space<vmem>>, vector<1x32xf32>
    %6 = vector.broadcast %5 : vector<1x32xf32> to vector<16x32xf32>
    %7 = arith.addf %4, %6 : vector<16x32xf32>
    %8 = vector.extract_strided_slice %3 {offsets = [0, 32], sizes = [16, 32], strides = [1, 1]} : vector<16x96xf32> to vector<16x32xf32>
    %c1 = arith.constant 1 : index
    %c0_5 = arith.constant 0 : index
    %9 = vector.load %arg4[%c1, %c0_5] : memref<16x128xf32, #tpu.memory_space<vmem>>, vector<1x32xf32>
    %10 = vector.broadcast %9 : vector<1x32xf32> to vector<16x32xf32>
    %11 = arith.addf %8, %10 : vector<16x32xf32>
    %12 = vector.extract_strided_slice %3 {offsets = [0, 64], sizes = [16, 32], strides = [1, 1]} : vector<16x96xf32> to vector<16x32xf32>
    %c2 = arith.constant 2 : index
    %c0_6 = arith.constant 0 : index
    %13 = vector.load %arg4[%c2, %c0_6] : memref<16x128xf32, #tpu.memory_space<vmem>>, vector<1x32xf32>
    %14 = vector.broadcast %13 : vector<1x32xf32> to vector<16x32xf32>
    %15 = arith.addf %12, %14 : vector<16x32xf32>
    %16 = arith.truncf %7 : vector<16x32xf32> to vector<16x32xbf16>
    %17 = vector.shape_cast %16 : vector<16x32xbf16> to vector<16x4x8xbf16>
    %18 = tpu.transpose %17, [1, 0, 2] : vector<16x4x8xbf16> -> vector<4x16x8xbf16>
    %19 = arith.truncf %11 : vector<16x32xf32> to vector<16x32xbf16>
    %20 = vector.shape_cast %19 : vector<16x32xbf16> to vector<16x4x8xbf16>
    %21 = tpu.transpose %20, [1, 0, 2] : vector<16x4x8xbf16> -> vector<4x16x8xbf16>
    %22 = arith.truncf %15 : vector<16x32xf32> to vector<16x32xbf16>
    %23 = vector.shape_cast %22 : vector<16x32xbf16> to vector<16x4x8xbf16>
    %24 = tpu.transpose %23, [1, 0, 2] : vector<16x4x8xbf16> -> vector<4x16x8xbf16>
    "tpu.trace_start"() <{level = 10 : i32, message = "hqd,hkd->hqk"}> : () -> ()
    %cst_7 = arith.constant dense<0.000000e+00> : vector<4x16x16xf32>
    %25 = tpu.matmul %18, %21, %cst_7 {dimension_numbers = #tpu.dot_dimension_numbers<[2], [2], [1], [1], [0, 0, 0, 1, 1, 1], [0], [0]>} : vector<4x16x8xbf16>, vector<4x16x8xbf16>, vector<4x16x16xf32> -> vector<4x16x16xf32>
    "tpu.trace_stop"() : () -> ()
    %cst_8 = arith.constant 0.353553385 : f32
    %26 = vector.broadcast %cst_8 : f32 to vector<4x16x16xf32>
    %27 = arith.mulf %25, %26 : vector<4x16x16xf32>
    %c0_9 = arith.constant 0 : index
    %c0_10 = arith.constant 0 : index
    %28 = vector.load %arg2[%c0_9, %c0_10] : memref<16x16xf32, #tpu.memory_space<vmem>>, vector<16x16xf32>
    %29 = vector.shape_cast %28 : vector<16x16xf32> to vector<1x16x16xf32>
    %30 = vector.broadcast %29 : vector<1x16x16xf32> to vector<4x16x16xf32>
    %31 = arith.addf %27, %30 : vector<4x16x16xf32>
    %cst_11 = arith.constant dense<0xFF800000> : vector<4x16xf32>
    %32 = vector.multi_reduction <maximumf>, %31, %cst_11 [2] : vector<4x16x16xf32> to vector<4x16xf32>
    %33 = vector.shape_cast %32 : vector<4x16xf32> to vector<4x16x1xf32>
    %34 = vector.broadcast %33 : vector<4x16x1xf32> to vector<4x16x16xf32>
    %35 = arith.subf %31, %34 : vector<4x16x16xf32>
    %36 = math.exp %35 : vector<4x16x16xf32>
    %cst_12 = arith.constant dense<0.000000e+00> : vector<4x16xf32>
    %37 = vector.multi_reduction <add>, %36, %cst_12 [2] : vector<4x16x16xf32> to vector<4x16xf32>
    %38 = vector.shape_cast %37 : vector<4x16xf32> to vector<4x16x1xf32>
    %39 = tpu.reciprocal %38 {approx = true} : vector<4x16x1xf32> -> vector<4x16x1xf32>
    %40 = vector.broadcast %39 : vector<4x16x1xf32> to vector<4x16x16xf32>
    %41 = arith.mulf %36, %40 : vector<4x16x16xf32>
    %42 = arith.truncf %41 : vector<4x16x16xf32> to vector<4x16x16xbf16>
    "tpu.trace_start"() <{level = 10 : i32, message = "hqk,hkd->hqd"}> : () -> ()
    %cst_13 = arith.constant dense<0.000000e+00> : vector<4x16x8xf32>
    %43 = tpu.matmul %42, %24, %cst_13 {dimension_numbers = #tpu.dot_dimension_numbers<[2], [1], [1], [2], [0, 0, 0, 1, 1, 2], [0], [0]>} : vector<4x16x16xbf16>, vector<4x16x8xbf16>, vector<4x16x8xf32> -> vector<4x16x8xf32>
    "tpu.trace_stop"() : () -> ()
    %44 = tpu.transpose %43, [1, 0, 2] : vector<4x16x8xf32> -> vector<16x4x8xf32>
    %45 = vector.shape_cast %44 : vector<16x4x8xf32> to vector<16x32xf32>
    %c32 = arith.constant 32 : index
    %c0_14 = arith.constant 0 : index
    %46 = vector.load %arg3[%c32, %c0_14] : memref<160x128xbf16, #tpu.memory_space<vmem>>, vector<32x32xbf16>
    %47 = arith.truncf %45 : vector<16x32xf32> to vector<16x32xbf16>
    %cst_15 = arith.constant dense<0.000000e+00> : vector<16x32xf32>
    %48 = tpu.matmul %47, %46, %cst_15 {dimension_numbers = #tpu.dot_dimension_numbers<[1], [0], [0], [1], [0, 0, 1, 1], [], []>} : vector<16x32xbf16>, vector<32x32xbf16>, vector<16x32xf32> -> vector<16x32xf32>
    %c3 = arith.constant 3 : index
    %c0_16 = arith.constant 0 : index
    %49 = vector.load %arg4[%c3, %c0_16] : memref<16x128xf32, #tpu.memory_space<vmem>>, vector<1x32xf32>
    %50 = vector.broadcast %49 : vector<1x32xf32> to vector<16x32xf32>
    %51 = arith.addf %48, %50 : vector<16x32xf32>
    %52 = arith.addf %0, %51 : vector<16x32xf32>
    %c4 = arith.constant 4 : index
    %c0_17 = arith.constant 0 : index
    %53 = vector.load %arg4[%c4, %c0_17] : memref<16x128xf32, #tpu.memory_space<vmem>>, vector<1x32xf32>
    %c5 = arith.constant 5 : index
    %c0_18 = arith.constant 0 : index
    %54 = vector.load %arg4[%c5, %c0_18] : memref<16x128xf32, #tpu.memory_space<vmem>>, vector<1x32xf32>
    %cst_19 = arith.constant dense<0.000000e+00> : vector<16xf32>
    %55 = vector.multi_reduction <add>, %52, %cst_19 [1] : vector<16x32xf32> to vector<16xf32>
    %56 = vector.shape_cast %55 : vector<16xf32> to vector<16x1xf32>
    %cst_20 = arith.constant 3.200000e+01 : f32
    %57 = vector.broadcast %cst_20 : f32 to vector<16x1xf32>
    %58 = arith.divf %56, %57 : vector<16x1xf32>
    %59 = vector.broadcast %58 : vector<16x1xf32> to vector<16x32xf32>
    %60 = arith.subf %52, %59 : vector<16x32xf32>
    %61 = arith.mulf %60, %60 : vector<16x32xf32>
    %cst_21 = arith.constant dense<0.000000e+00> : vector<16xf32>
    %62 = vector.multi_reduction <add>, %61, %cst_21 [1] : vector<16x32xf32> to vector<16xf32>
    %63 = vector.shape_cast %62 : vector<16xf32> to vector<16x1xf32>
    %cst_22 = arith.constant 3.200000e+01 : f32
    %64 = vector.broadcast %cst_22 : f32 to vector<16x1xf32>
    %65 = arith.divf %63, %64 : vector<16x1xf32>
    %66 = vector.broadcast %58 : vector<16x1xf32> to vector<16x32xf32>
    %67 = arith.subf %52, %66 : vector<16x32xf32>
    %cst_23 = arith.constant 9.99999974E-6 : f32
    %68 = vector.broadcast %cst_23 : f32 to vector<16x1xf32>
    %69 = arith.addf %65, %68 : vector<16x1xf32>
    %70 = math.rsqrt %69 : vector<16x1xf32>
    %71 = vector.broadcast %70 : vector<16x1xf32> to vector<16x32xf32>
    %72 = arith.mulf %67, %71 : vector<16x32xf32>
    %73 = vector.broadcast %53 : vector<1x32xf32> to vector<16x32xf32>
    %74 = arith.mulf %72, %73 : vector<16x32xf32>
    %75 = vector.broadcast %54 : vector<1x32xf32> to vector<16x32xf32>
    %76 = arith.addf %74, %75 : vector<16x32xf32>
    %c64 = arith.constant 64 : index
    %c0_24 = arith.constant 0 : index
    %77 = vector.load %arg3[%c64, %c0_24] : memref<160x128xbf16, #tpu.memory_space<vmem>>, vector<32x64xbf16>
    %c96 = arith.constant 96 : index
    %c0_25 = arith.constant 0 : index
    %78 = vector.load %arg3[%c96, %c0_25] : memref<160x128xbf16, #tpu.memory_space<vmem>>, vector<64x32xbf16>
    %79 = arith.truncf %76 : vector<16x32xf32> to vector<16x32xbf16>
    %cst_26 = arith.constant dense<0.000000e+00> : vector<16x64xf32>
    %80 = tpu.matmul %79, %77, %cst_26 {dimension_numbers = #tpu.dot_dimension_numbers<[1], [0], [0], [1], [0, 0, 1, 1], [], []>} : vector<16x32xbf16>, vector<32x64xbf16>, vector<16x64xf32> -> vector<16x64xf32>
    %c6 = arith.constant 6 : index
    %c0_27 = arith.constant 0 : index
    %81 = vector.load %arg4[%c6, %c0_27] : memref<16x128xf32, #tpu.memory_space<vmem>>, vector<1x64xf32>
    %82 = vector.broadcast %81 : vector<1x64xf32> to vector<16x64xf32>
    %83 = arith.addf %80, %82 : vector<16x64xf32>
    %cst_28 = arith.constant 0.000000e+00 : f32
    %84 = vector.broadcast %cst_28 : f32 to vector<16x64xf32>
    %85 = arith.maximumf %83, %84 : vector<16x64xf32>
    %86 = arith.truncf %85 : vector<16x64xf32> to vector<16x64xbf16>
    %cst_29 = arith.constant dense<0.000000e+00> : vector<16x32xf32>
    %87 = tpu.matmul %86, %78, %cst_29 {dimension_numbers = #tpu.dot_dimension_numbers<[1], [0], [0], [1], [0, 0, 1, 1], [], []>} : vector<16x64xbf16>, vector<64x32xbf16>, vector<16x32xf32> -> vector<16x32xf32>
    %c7 = arith.constant 7 : index
    %c0_30 = arith.constant 0 : index
    %88 = vector.load %arg4[%c7, %c0_30] : memref<16x128xf32, #tpu.memory_space<vmem>>, vector<1x32xf32>
    %89 = vector.broadcast %88 : vector<1x32xf32> to vector<16x32xf32>
    %90 = arith.addf %87, %89 : vector<16x32xf32>
    %91 = arith.addf %76, %90 : vector<16x32xf32>
    %c8 = arith.constant 8 : index
    %c0_31 = arith.constant 0 : index
    %92 = vector.load %arg4[%c8, %c0_31] : memref<16x128xf32, #tpu.memory_space<vmem>>, vector<1x32xf32>
    %c9 = arith.constant 9 : index
    %c0_32 = arith.constant 0 : index
    %93 = vector.load %arg4[%c9, %c0_32] : memref<16x128xf32, #tpu.memory_space<vmem>>, vector<1x32xf32>
    %cst_33 = arith.constant dense<0.000000e+00> : vector<16xf32>
    %94 = vector.multi_reduction <add>, %91, %cst_33 [1] : vector<16x32xf32> to vector<16xf32>
    %95 = vector.shape_cast %94 : vector<16xf32> to vector<16x1xf32>
    %cst_34 = arith.constant 3.200000e+01 : f32
    %96 = vector.broadcast %cst_34 : f32 to vector<16x1xf32>
    %97 = arith.divf %95, %96 : vector<16x1xf32>
    %98 = vector.broadcast %97 : vector<16x1xf32> to vector<16x32xf32>
    %99 = arith.subf %91, %98 : vector<16x32xf32>
    %100 = arith.mulf %99, %99 : vector<16x32xf32>
    %cst_35 = arith.constant dense<0.000000e+00> : vector<16xf32>
    %101 = vector.multi_reduction <add>, %100, %cst_35 [1] : vector<16x32xf32> to vector<16xf32>
    %102 = vector.shape_cast %101 : vector<16xf32> to vector<16x1xf32>
    %cst_36 = arith.constant 3.200000e+01 : f32
    %103 = vector.broadcast %cst_36 : f32 to vector<16x1xf32>
    %104 = arith.divf %102, %103 : vector<16x1xf32>
    %105 = vector.broadcast %97 : vector<16x1xf32> to vector<16x32xf32>
    %106 = arith.subf %91, %105 : vector<16x32xf32>
    %cst_37 = arith.constant 9.99999974E-6 : f32
    %107 = vector.broadcast %cst_37 : f32 to vector<16x1xf32>
    %108 = arith.addf %104, %107 : vector<16x1xf32>
    %109 = math.rsqrt %108 : vector<16x1xf32>
    %110 = vector.broadcast %109 : vector<16x1xf32> to vector<16x32xf32>
    %111 = arith.mulf %106, %110 : vector<16x32xf32>
    %112 = vector.broadcast %92 : vector<1x32xf32> to vector<16x32xf32>
    %113 = arith.mulf %111, %112 : vector<16x32xf32>
    %114 = vector.broadcast %93 : vector<1x32xf32> to vector<16x32xf32>
    %115 = arith.addf %113, %114 : vector<16x32xf32>
    %c0_38 = arith.constant 0 : index
    %c0_39 = arith.constant 0 : index
    %116 = vector.load %arg5[%c0_38, %c0_39] : memref<16x32xf32, #tpu.memory_space<vmem>>, vector<16x32xf32>
    tpu.vector_store %arg5[%c0_38, %c0_39], %115 {strides = array<i32>} : memref<16x32xf32, #tpu.memory_space<vmem>>, vector<16x32xf32>,
    return
  }
  func.func @transform_0(%arg0: i32) -> (i32, i32) {
    %c0_i32 = arith.constant 0 : i32
    %c0_i32_0 = arith.constant 0 : i32
    %c0_i32_1 = arith.constant 0 : i32
    return %c0_i32, %c0_i32_0 : i32, i32
  }
  func.func @transform_1(%arg0: i32) -> (i32, i32) {
    %c0_i32 = arith.constant 0 : i32
    %c0_i32_0 = arith.constant 0 : i32
    %c0_i32_1 = arith.constant 0 : i32
    return %c0_i32, %c0_i32_0 : i32, i32
  }
  func.func @transform_2(%arg0: i32) -> (i32, i32) {
    %c0_i32 = arith.constant 0 : i32
    %c0_i32_0 = arith.constant 0 : i32
    %c0_i32_1 = arith.constant 0 : i32
    return %c0_i32, %c0_i32_0 : i32, i32
  }
  func.func @transform_3(%arg0: i32) -> (i32, i32) {
    %c0_i32 = arith.constant 0 : i32
    %c0_i32_0 = arith.constant 0 : i32
    %c0_i32_1 = arith.constant 0 : i32
    return %c0_i32, %c0_i32_0 : i32, i32
  }
  func.func @transform_4(%arg0: i32) -> (i32, i32) {
    %c0_i32 = arith.constant 0 : i32
    %c0_i32_0 = arith.constant 0 : i32
    %c0_i32_1 = arith.constant 0 : i32
    return %c0_i32, %c0_i32_0 : i32, i32
  }
}

</mosaic_0001>

<llo_original>
// kernel: encoder_layer_self.1
$region0: #{encoder_layer_self.1}
  #allocation0 [shape = 'u32[]', space=smem, size = 0x4, offset = 0x4, fixed_abs, tag = 'smem constant byte address 0x4 - core index']
  #allocation1 [shape = 'u32[144,128]{1,0:T(1,128)}', space=vmem, size = 0x12000, scoped, tag = 'internal scratch']
  %s0 = inlined_call_operand.vmem [shape: f32[16,32], index: 0, kind: input, shape index: {}]
  %s1 = inlined_call_operand.vmem [shape: f32[16,16], index: 1, kind: input, shape index: {}]
  %s2 = inlined_call_operand.vmem [shape: bf16[160,128], index: 2, kind: input, shape index: {}]
  %s3 = inlined_call_operand.vmem [shape: f32[16,128], index: 3, kind: input, shape index: {}]
  %s4 = inlined_call_operand.hbm [shape: f32[16,32], index: 4, kind: output, shape index: {}]
  %s5 = sld [smem:[#allocation0]]
  $region26: #{encoder_layer_self.1} parent=0
    _
  %s7 = ssub.s32 1, %s5
  %s8 = scalar_select 0, %s7, %s5
  $region1: #{encoder_layer_self.1} parent=0
    #allocation2 [shape = 'u8[8192]{0}', space=vmem, size = 0x2000, scoped, tag = 'output window, operand 0, single buffered']
    #allocation3 [shape = 's32[1]{0}', space=sflag, size = 0x4, scoped, tag = 'scoped memory for encoder_layer_self.1']
    %9 = vsyncpa [#allocation3], 0
    // Predicated region
    $region2: #{encoder_layer_self.1} parent=1 // pred_check
      _
    $region3: #{encoder_layer_self.1} parent=1 // pred_check_branch
      %11 = sbr.rel (0) target = $region5
    $region4: #{encoder_layer_self.1} parent=1 // pred_region
      _
    $region5: #{encoder_layer_self.1} parent=1 // pred_fallthru
      _
    // Predicated region
    $region6: #{encoder_layer_self.1} parent=1 // pred_check
      _
    $region7: #{encoder_layer_self.1} parent=1 // pred_check_branch
      %13 = sbr.rel (0) target = $region9
    $region8: #{encoder_layer_self.1} parent=1 // pred_region
      _
    $region9: #{encoder_layer_self.1} parent=1 // pred_fallthru
      _
    // Predicated region
    $region10: #{encoder_layer_self.1} parent=1 // pred_check
      _
    $region11: #{encoder_layer_self.1} parent=1 // pred_check_branch
      %15 = sbr.rel (0) target = $region13
    $region12: #{encoder_layer_self.1} parent=1 // pred_region
      _
    $region13: #{encoder_layer_self.1} parent=1 // pred_fallthru
      _
    // Predicated region
    $region14: #{encoder_layer_self.1} parent=1 // pred_check
      _
    $region15: #{encoder_layer_self.1} parent=1 // pred_check_branch
      %17 = sbr.rel (0) target = $region17
    $region16: #{encoder_layer_self.1} parent=1 // pred_region
      _
    $region17: #{encoder_layer_self.1} parent=1 // pred_fallthru
      _
    %v19 = vld [vmem:[%s0] sm:$0xff]
    %v20 = vld [vmem:[%s0 + $0x8] sm:$0xff]
    %v21 = vpack.c.bf16 %v20, %v19
    %v22 = vld [vmem:[%s2] sm:$0xf]
    %v23 = vld [vmem:[%s2 + $0x4] sm:$0xf]
    %v24 = vld [vmem:[%s2 + $0x8] sm:$0xf]
    %v25 = vld [vmem:[%s2 + $0xc] sm:$0xf]
    %v30 = vunpack.c.l.b16 %v22
    %v31 = vunpack.c.l.b16 %v23
    %v32 = vunpack.c.l.b16 %v24
    %v33 = vunpack.c.l.b16 %v25
    %v34 = vpack.c.b16 %v31, %v30
    %v35 = vpack.c.b16 %v33, %v32
    %vm38 = vcmask 261120
    %v40 = vsel %vm38, %v21, 0
    %42 = vmatprep.subr.bf16.mxu0 0
    %43 = vmatpush1.bf16.msra.mxu0 0
    %44 = vmatprep.subr.bf16.mxu0 0
    %45 = vmatpush1.bf16.msra.mxu0 0
    %46 = vmatprep.subr.bf16.mxu0 0
    %47 = vmatpush1.bf16.msra.mxu0 0
    %48 = vmatprep.subr.bf16.mxu0 0
    %49 = vmatpush1.bf16.msra.mxu0 0
    %50 = vmatprep.subr.bf16.mxu0 0
    %51 = vmatpush1.bf16.msra.mxu0 0
    %52 = vmatprep.subr.bf16.mxu0 0
    %53 = vmatpush1.bf16.msra.mxu0 0
    %54 = vmatprep.subr.bf16.mxu0 0
    %55 = vmatpush1.bf16.msra.mxu0 %v35
    %56 = vmatprep.subr.bf16.mxu0 0
    %57 = vmatpush1.bf16.msra.mxu0 %v34
    %58 = vmatprep.subr.bf16.mxu0 0
    %59 = vmatpush2.bf16.msra.mxu0 0
    %60 = vmatprep.subr.bf16.mxu0 0
    %61 = vmatpush2.bf16.msra.mxu0 0
    %62 = vmatprep.subr.bf16.mxu0 0
    %63 = vmatpush2.bf16.msra.mxu0 0
    %64 = vmatprep.subr.bf16.mxu0 0
    %65 = vmatpush2.bf16.msra.mxu0 0
    %66 = vmatprep.subr.bf16.mxu0 0
    %67 = vmatpush2.bf16.msra.mxu0 0
    %68 = vmatprep.subr.bf16.mxu0 0
    %69 = vmatpush2.bf16.msra.mxu0 0
    %70 = vmatprep.subr.bf16.mxu0 0
    %71 = vmatpush2.bf16.msra.mxu0 0
    %72 = vmatprep.subr.bf16.mxu0 0
    %73 = vmatpush2.bf16.msra.mxu0 0
    %74 = vmatprep.mubr.bf16.mxu0 0
    %75 = vmatmul.mubr.bf16.gmra.mxu0 %v40
    %v76 = vpop.f32.mrf.mxu0
    %v77 = vadd.f32 0.0, %v76
    %v78 = vpop.f32.mrf.mxu0
    %v79 = vpop.f32.mrf.mxu0
    %v80 = vadd.f32 0.0, %v79
    %v81 = vpop.f32.mrf.mxu0
    %82 = vdwg.mxu0
    %v83 = vld [vmem:[%s3] sm:$0x1]
    %v84 = vlaneseq
    %v85 = vshrl.u32 %v84, 7
    %v86 = vsub.s32 0, %v85
    %v87 = vrot.slane %v83, %v86
    %v88 = vadd.f32 %v77, %v87
    %v89 = vadd.f32 %v80, %v87
    %v90 = vld [vmem:[%s3 + $0x1] sm:$0x1]
    %v91 = vlaneseq
    %v92 = vshrl.u32 %v91, 7
    %v93 = vsub.s32 0, %v92
    %v94 = vrot.slane %v90, %v93
    %96 = vrot.lane.b32.xlu0 %v94, 32
    %v97 = vpop.permute.xlu0 %96
    %v99 = vadd.f32 %v77, %v97
    %v100 = vadd.f32 %v80, %v97
    %v101 = vld [vmem:[%s3 + $0x2] sm:$0x1]
    %v102 = vlaneseq
    %v103 = vshrl.u32 %v102, 7
    %v104 = vsub.s32 0, %v103
    %v105 = vrot.slane %v101, %v104
    %107 = vrot.lane.b32.xlu0 %v105, 64
    %v108 = vpop.permute.xlu0 %107
    %v110 = vadd.f32 %v77, %v108
    %v111 = vadd.f32 %v80, %v108
    %v112 = vpack.c.bf16 %v89, %v88
    %114 = vrot.lane.b32.xlu0 %v112, 120
    %v115 = vpop.permute.xlu0 %114
    %116 = vrot.lane.b32.xlu0 %v112, 112
    %v117 = vpop.permute.xlu0 %116
    %118 = vrot.lane.b32.xlu0 %v112, 104
    %v119 = vpop.permute.xlu0 %118
    %v122 = vpack.i.b16 %v115, %v112
    %v124 = vshrl.u32 %v112, 16
    %v125 = vshrl.u32 %v115, 16
    %v126 = vpack.i.b16 %v125, %v124
    %v130 = vpack.i.b16 %v119, %v117
    %v132 = vshrl.u32 %v117, 16
    %v133 = vshrl.u32 %v119, 16
    %v134 = vpack.i.b16 %v133, %v132
    %v137 = vpack.i.b16 0, 0
    %v139 = vshrl.u32 0, 16
    %v140 = vpack.i.b16 %v139, %v139
    %v142 = vcombine.high %v122, %v137
    %v144 = vunpack.c.l.s4 1983009808
    %v145 = vunpack.c.0.s8 %v144
    %v146 = vlaneseq
    %v147 = vshrl.u32 %v146, 7
    %v148 = vsub.s32 %v145, %v147
    %v149 = vrot.slane %v122, %v148
    %v151 = vunpack.c.l.s4 1983009808
    %v152 = vunpack.c.0.s8 %v151
    %v153 = vlaneseq
    %v154 = vshrl.u32 %v153, 7
    %v155 = vsub.s32 %v152, %v154
    %v156 = vrot.slane %v142, %v155
    %v157 = vcombine.high %v130, %v137
    %v159 = vunpack.c.l.s4 1983009808
    %v160 = vunpack.c.0.s8 %v159
    %v161 = vlaneseq
    %v162 = vshrl.u32 %v161, 7
    %v163 = vsub.s32 %v160, %v162
    %v164 = vrot.slane %v130, %v163
    %v166 = vunpack.c.l.s4 1983009808
    %v167 = vunpack.c.0.s8 %v166
    %v168 = vlaneseq
    %v169 = vshrl.u32 %v168, 7
    %v170 = vsub.s32 %v167, %v169
    %v171 = vrot.slane %v157, %v170
    %v172 = vcombine.low %v149, %v164
    %v173 = vcombine.high %v149, %v164
    %v175 = vunpack.c.l.s4 1934713408
    %v176 = vunpack.c.0.s8 %v175
    %v177 = vlaneseq
    %v178 = vshrl.u32 %v177, 7
    %v179 = vsub.s32 %v176, %v178
    %v180 = vrot.slane %v172, %v179
    %v182 = vunpack.c.l.s4 1934713408
    %v183 = vunpack.c.0.s8 %v182
    %v184 = vlaneseq
    %v185 = vshrl.u32 %v184, 7
    %v186 = vsub.s32 %v183, %v185
    %v187 = vrot.slane %v173, %v186
    %v188 = vcombine.low %v156, %v171
    %v189 = vcombine.high %v156, %v171
    %v191 = vunpack.c.l.s4 1934713408
    %v192 = vunpack.c.0.s8 %v191
    %v193 = vlaneseq
    %v194 = vshrl.u32 %v193, 7
    %v195 = vsub.s32 %v192, %v194
    %v196 = vrot.slane %v188, %v195
    %v198 = vunpack.c.l.s4 1934713408
    %v199 = vunpack.c.0.s8 %v198
    %v200 = vlaneseq
    %v201 = vshrl.u32 %v200, 7
    %v202 = vsub.s32 %v199, %v201
    %v203 = vrot.slane %v189, %v202
    %v204 = vcombine.high %v180, 0
    %v205 = vcombine.high %v187, 0
    %v206 = vcombine.high %v196, 0
    %v207 = vcombine.high %v203, 0
    %v208 = vcombine.high %v126, %v140
    %v210 = vunpack.c.l.s4 1983009808
    %v211 = vunpack.c.0.s8 %v210
    %v212 = vlaneseq
    %v213 = vshrl.u32 %v212, 7
    %v214 = vsub.s32 %v211, %v213
    %v215 = vrot.slane %v126, %v214
    %v217 = vunpack.c.l.s4 1983009808
    %v218 = vunpack.c.0.s8 %v217
    %v219 = vlaneseq
    %v220 = vshrl.u32 %v219, 7
    %v221 = vsub.s32 %v218, %v220
    %v222 = vrot.slane %v208, %v221
    %v223 = vcombine.high %v134, %v140
    %v225 = vunpack.c.l.s4 1983009808
    %v226 = vunpack.c.0.s8 %v225
    %v227 = vlaneseq
    %v228 = vshrl.u32 %v227, 7
    %v229 = vsub.s32 %v226, %v228
    %v230 = vrot.slane %v134, %v229
    %v232 = vunpack.c.l.s4 1983009808
    %v233 = vunpack.c.0.s8 %v232
    %v234 = vlaneseq
    %v235 = vshrl.u32 %v234, 7
    %v236 = vsub.s32 %v233, %v235
    %v237 = vrot.slane %v223, %v236
    %v238 = vcombine.low %v215, %v230
    %v239 = vcombine.high %v215, %v230
    %v241 = vunpack.c.l.s4 1934713408
    %v242 = vunpack.c.0.s8 %v241
    %v243 = vlaneseq
    %v244 = vshrl.u32 %v243, 7
    %v245 = vsub.s32 %v242, %v244
    %v246 = vrot.slane %v238, %v245
    %v248 = vunpack.c.l.s4 1934713408
    %v249 = vunpack.c.0.s8 %v248
    %v250 = vlaneseq
    %v251 = vshrl.u32 %v250, 7
    %v252 = vsub.s32 %v249, %v251
    %v253 = vrot.slane %v239, %v252
    %v254 = vcombine.low %v222, %v237
    %v255 = vcombine.high %v222, %v237
    %v257 = vunpack.c.l.s4 1934713408
    %v258 = vunpack.c.0.s8 %v257
    %v259 = vlaneseq
    %v260 = vshrl.u32 %v259, 7
    %v261 = vsub.s32 %v258, %v260
    %v262 = vrot.slane %v254, %v261
    %v264 = vunpack.c.l.s4 1934713408
    %v265 = vunpack.c.0.s8 %v264
    %v266 = vlaneseq
    %v267 = vshrl.u32 %v266, 7
    %v268 = vsub.s32 %v265, %v267
    %v269 = vrot.slane %v255, %v268
    %v270 = vcombine.high %v246, 0
    %v271 = vcombine.high %v253, 0
    %v272 = vcombine.high %v262, 0
    %v273 = vcombine.high %v269, 0
    %v274 = vcombine.low %v180, %v187
    %v276 = vunpack.c.l.s4 1983009808
    %v277 = vunpack.c.0.s8 %v276
    %v278 = vlaneseq
    %v279 = vshrl.u32 %v278, 7
    %v280 = vsub.s32 %v277, %v279
    %v281 = vrot.slane %v274, %v280
    %v282 = vcombine.low %v204, %v205
    %v284 = vunpack.c.l.s4 1983009808
    %v285 = vunpack.c.0.s8 %v284
    %v286 = vlaneseq
    %v287 = vshrl.u32 %v286, 7
    %v288 = vsub.s32 %v285, %v287
    %v289 = vrot.slane %v282, %v288
    %v290 = vcombine.low %v196, %v203
    %v292 = vunpack.c.l.s4 1983009808
    %v293 = vunpack.c.0.s8 %v292
    %v294 = vlaneseq
    %v295 = vshrl.u32 %v294, 7
    %v296 = vsub.s32 %v293, %v295
    %v297 = vrot.slane %v290, %v296
    %v298 = vcombine.low %v206, %v207
    %v300 = vunpack.c.l.s4 1983009808
    %v301 = vunpack.c.0.s8 %v300
    %v302 = vlaneseq
    %v303 = vshrl.u32 %v302, 7
    %v304 = vsub.s32 %v301, %v303
    %v305 = vrot.slane %v298, %v304
    %v306 = vcombine.low %v281, %v289
    %v308 = vunpack.c.l.s4 1934713408
    %v309 = vunpack.c.0.s8 %v308
    %v310 = vlaneseq
    %v311 = vshrl.u32 %v310, 7
    %v312 = vsub.s32 %v309, %v311
    %v313 = vrot.slane %v306, %v312
    %v314 = vcombine.low %v297, %v305
    %v316 = vunpack.c.l.s4 1934713408
    %v317 = vunpack.c.0.s8 %v316
    %v318 = vlaneseq
    %v319 = vshrl.u32 %v318, 7
    %v320 = vsub.s32 %v317, %v319
    %v321 = vrot.slane %v314, %v320
    %v322 = vcombine.low %v313, %v321
    %v323 = vcombine.high %v313, %v321
    %v324 = vcombine.low %v246, %v253
    %v326 = vunpack.c.l.s4 1983009808
    %v327 = vunpack.c.0.s8 %v326
    %v328 = vlaneseq
    %v329 = vshrl.u32 %v328, 7
    %v330 = vsub.s32 %v327, %v329
    %v331 = vrot.slane %v324, %v330
    %v332 = vcombine.low %v270, %v271
    %v334 = vunpack.c.l.s4 1983009808
    %v335 = vunpack.c.0.s8 %v334
    %v336 = vlaneseq
    %v337 = vshrl.u32 %v336, 7
    %v338 = vsub.s32 %v335, %v337
    %v339 = vrot.slane %v332, %v338
    %v340 = vcombine.low %v262, %v269
    %v342 = vunpack.c.l.s4 1983009808
    %v343 = vunpack.c.0.s8 %v342
    %v344 = vlaneseq
    %v345 = vshrl.u32 %v344, 7
    %v346 = vsub.s32 %v343, %v345
    %v347 = vrot.slane %v340, %v346
    %v348 = vcombine.low %v272, %v273
    %v350 = vunpack.c.l.s4 1983009808
    %v351 = vunpack.c.0.s8 %v350
    %v352 = vlaneseq
    %v353 = vshrl.u32 %v352, 7
    %v354 = vsub.s32 %v351, %v353
    %v355 = vrot.slane %v348, %v354
    %v356 = vcombine.low %v331, %v339
    %v358 = vunpack.c.l.s4 1934713408
    %v359 = vunpack.c.0.s8 %v358
    %v360 = vlaneseq
    %v361 = vshrl.u32 %v360, 7
    %v362 = vsub.s32 %v359, %v361
    %v363 = vrot.slane %v356, %v362
    %v364 = vcombine.low %v347, %v355
    %v366 = vunpack.c.l.s4 1934713408
    %v367 = vunpack.c.0.s8 %v366
    %v368 = vlaneseq
    %v369 = vshrl.u32 %v368, 7
    %v370 = vsub.s32 %v367, %v369
    %v371 = vrot.slane %v364, %v370
    %v372 = vcombine.low %v363, %v371
    %v373 = vcombine.high %v363, %v371
    %v376 = vpack.i.b16 %v372, %v322
    %v377 = vshrl.u32 %v322, 16
    %v378 = vshrl.u32 %v372, 16
    %v379 = vpack.i.b16 %v378, %v377
    %v382 = vpack.i.b16 %v373, %v323
    %v383 = vshrl.u32 %v323, 16
    %v384 = vshrl.u32 %v373, 16
    %v385 = vpack.i.b16 %v384, %v383
    %v386 = vpack.c.bf16 %v100, %v99
    %388 = vrot.lane.b32.xlu0 %v386, 120
    %v389 = vpop.permute.xlu0 %388
    %390 = vrot.lane.b32.xlu0 %v386, 112
    %v391 = vpop.permute.xlu0 %390
    %392 = vrot.lane.b32.xlu0 %v386, 104
    %v393 = vpop.permute.xlu0 %392
    %394 = vrot.lane.b32.xlu0 %v386, 96
    %v395 = vpop.permute.xlu0 %394
    %396 = vrot.lane.b32.xlu0 %v389, 96
    %v397 = vpop.permute.xlu0 %396
    %398 = vrot.lane.b32.xlu0 %v391, 96
    %v399 = vpop.permute.xlu0 %398
    %400 = vrot.lane.b32.xlu0 %v393, 96
    %v401 = vpop.permute.xlu0 %400
    %v404 = vpack.i.b16 %v397, %v395
    %v406 = vshrl.u32 %v395, 16
    %v407 = vshrl.u32 %v397, 16
    %v408 = vpack.i.b16 %v407, %v406
    %v412 = vpack.i.b16 %v401, %v399
    %v414 = vshrl.u32 %v399, 16
    %v415 = vshrl.u32 %v401, 16
    %v416 = vpack.i.b16 %v415, %v414
    %v418 = vcombine.high %v404, %v137
    %v420 = vunpack.c.l.s4 1983009808
    %v421 = vunpack.c.0.s8 %v420
    %v422 = vlaneseq
    %v423 = vshrl.u32 %v422, 7
    %v424 = vsub.s32 %v421, %v423
    %v425 = vrot.slane %v404, %v424
    %v427 = vunpack.c.l.s4 1983009808
    %v428 = vunpack.c.0.s8 %v427
    %v429 = vlaneseq
    %v430 = vshrl.u32 %v429, 7
    %v431 = vsub.s32 %v428, %v430
    %v432 = vrot.slane %v418, %v431
    %v433 = vcombine.high %v412, %v137
    %v435 = vunpack.c.l.s4 1983009808
    %v436 = vunpack.c.0.s8 %v435
    %v437 = vlaneseq
    %v438 = vshrl.u32 %v437, 7
    %v439 = vsub.s32 %v436, %v438
    %v440 = vrot.slane %v412, %v439
    %v442 = vunpack.c.l.s4 1983009808
    %v443 = vunpack.c.0.s8 %v442
    %v444 = vlaneseq
    %v445 = vshrl.u32 %v444, 7
    %v446 = vsub.s32 %v443, %v445
    %v447 = vrot.slane %v433, %v446
    %v448 = vcombine.low %v425, %v440
    %v449 = vcombine.high %v425, %v440
    %v451 = vunpack.c.l.s4 1934713408
    %v452 = vunpack.c.0.s8 %v451
    %v453 = vlaneseq
    %v454 = vshrl.u32 %v453, 7
    %v455 = vsub.s32 %v452, %v454
    %v456 = vrot.slane %v448, %v455
    %v458 = vunpack.c.l.s4 1934713408
    %v459 = vunpack.c.0.s8 %v458
    %v460 = vlaneseq
    %v461 = vshrl.u32 %v460, 7
    %v462 = vsub.s32 %v459, %v461
    %v463 = vrot.slane %v449, %v462
    %v464 = vcombine.low %v432, %v447
    %v465 = vcombine.high %v432, %v447
    %v467 = vunpack.c.l.s4 1934713408
    %v468 = vunpack.c.0.s8 %v467
    %v469 = vlaneseq
    %v470 = vshrl.u32 %v469, 7
    %v471 = vsub.s32 %v468, %v470
    %v472 = vrot.slane %v464, %v471
    %v474 = vunpack.c.l.s4 1934713408
    %v475 = vunpack.c.0.s8 %v474
    %v476 = vlaneseq
    %v477 = vshrl.u32 %v476, 7
    %v478 = vsub.s32 %v475, %v477
    %v479 = vrot.slane %v465, %v478
    %v480 = vcombine.high %v456, 0
    %v481 = vcombine.high %v463, 0
    %v482 = vcombine.high %v472, 0
    %v483 = vcombine.high %v479, 0
    %v484 = vcombine.high %v408, %v140
    %v486 = vunpack.c.l.s4 1983009808
    %v487 = vunpack.c.0.s8 %v486
    %v488 = vlaneseq
    %v489 = vshrl.u32 %v488, 7
    %v490 = vsub.s32 %v487, %v489
    %v491 = vrot.slane %v408, %v490
    %v493 = vunpack.c.l.s4 1983009808
    %v494 = vunpack.c.0.s8 %v493
    %v495 = vlaneseq
    %v496 = vshrl.u32 %v495, 7
    %v497 = vsub.s32 %v494, %v496
    %v498 = vrot.slane %v484, %v497
    %v499 = vcombine.high %v416, %v140
    %v501 = vunpack.c.l.s4 1983009808
    %v502 = vunpack.c.0.s8 %v501
    %v503 = vlaneseq
    %v504 = vshrl.u32 %v503, 7
    %v505 = vsub.s32 %v502, %v504
    %v506 = vrot.slane %v416, %v505
    %v508 = vunpack.c.l.s4 1983009808
    %v509 = vunpack.c.0.s8 %v508
    %v510 = vlaneseq
    %v511 = vshrl.u32 %v510, 7
    %v512 = vsub.s32 %v509, %v511
    %v513 = vrot.slane %v499, %v512
    %v514 = vcombine.low %v491, %v506
    %v515 = vcombine.high %v491, %v506
    %v517 = vunpack.c.l.s4 1934713408
    %v518 = vunpack.c.0.s8 %v517
    %v519 = vlaneseq
    %v520 = vshrl.u32 %v519, 7
    %v521 = vsub.s32 %v518, %v520
    %v522 = vrot.slane %v514, %v521
    %v524 = vunpack.c.l.s4 1934713408
    %v525 = vunpack.c.0.s8 %v524
    %v526 = vlaneseq
    %v527 = vshrl.u32 %v526, 7
    %v528 = vsub.s32 %v525, %v527
    %v529 = vrot.slane %v515, %v528
    %v530 = vcombine.low %v498, %v513
    %v531 = vcombine.high %v498, %v513
    %v533 = vunpack.c.l.s4 1934713408
    %v534 = vunpack.c.0.s8 %v533
    %v535 = vlaneseq
    %v536 = vshrl.u32 %v535, 7
    %v537 = vsub.s32 %v534, %v536
    %v538 = vrot.slane %v530, %v537
    %v540 = vunpack.c.l.s4 1934713408
    %v541 = vunpack.c.0.s8 %v540
    %v542 = vlaneseq
    %v543 = vshrl.u32 %v542, 7
    %v544 = vsub.s32 %v541, %v543
    %v545 = vrot.slane %v531, %v544
    %v546 = vcombine.high %v522, 0
    %v547 = vcombine.high %v529, 0
    %v548 = vcombine.high %v538, 0
    %v549 = vcombine.high %v545, 0
    %v550 = vcombine.low %v456, %v463
    %v552 = vunpack.c.l.s4 1983009808
    %v553 = vunpack.c.0.s8 %v552
    %v554 = vlaneseq
    %v555 = vshrl.u32 %v554, 7
    %v556 = vsub.s32 %v553, %v555
    %v557 = vrot.slane %v550, %v556
    %v558 = vcombine.low %v480, %v481
    %v560 = vunpack.c.l.s4 1983009808
    %v561 = vunpack.c.0.s8 %v560
    %v562 = vlaneseq
    %v563 = vshrl.u32 %v562, 7
    %v564 = vsub.s32 %v561, %v563
    %v565 = vrot.slane %v558, %v564
    %v566 = vcombine.low %v472, %v479
    %v568 = vunpack.c.l.s4 1983009808
    %v569 = vunpack.c.0.s8 %v568
    %v570 = vlaneseq
    %v571 = vshrl.u32 %v570, 7
    %v572 = vsub.s32 %v569, %v571
    %v573 = vrot.slane %v566, %v572
    %v574 = vcombine.low %v482, %v483
    %v576 = vunpack.c.l.s4 1983009808
    %v577 = vunpack.c.0.s8 %v576
    %v578 = vlaneseq
    %v579 = vshrl.u32 %v578, 7
    %v580 = vsub.s32 %v577, %v579
    %v581 = vrot.slane %v574, %v580
    %v582 = vcombine.low %v557, %v565
    %v584 = vunpack.c.l.s4 1934713408
    %v585 = vunpack.c.0.s8 %v584
    %v586 = vlaneseq
    %v587 = vshrl.u32 %v586, 7
    %v588 = vsub.s32 %v585, %v587
    %v589 = vrot.slane %v582, %v588
    %v590 = vcombine.low %v573, %v581
    %v592 = vunpack.c.l.s4 1934713408
    %v593 = vunpack.c.0.s8 %v592
    %v594 = vlaneseq
    %v595 = vshrl.u32 %v594, 7
    %v596 = vsub.s32 %v593, %v595
    %v597 = vrot.slane %v590, %v596
    %v598 = vcombine.low %v589, %v597
    %v599 = vcombine.high %v589, %v597
    %v600 = vcombine.low %v522, %v529
    %v602 = vunpack.c.l.s4 1983009808
    %v603 = vunpack.c.0.s8 %v602
    %v604 = vlaneseq
    %v605 = vshrl.u32 %v604, 7
    %v606 = vsub.s32 %v603, %v605
    %v607 = vrot.slane %v600, %v606
    %v608 = vcombine.low %v546, %v547
    %v610 = vunpack.c.l.s4 1983009808
    %v611 = vunpack.c.0.s8 %v610
    %v612 = vlaneseq
    %v613 = vshrl.u32 %v612, 7
    %v614 = vsub.s32 %v611, %v613
    %v615 = vrot.slane %v608, %v614
    %v616 = vcombine.low %v538, %v545
    %v618 = vunpack.c.l.s4 1983009808
    %v619 = vunpack.c.0.s8 %v618
    %v620 = vlaneseq
    %v621 = vshrl.u32 %v620, 7
    %v622 = vsub.s32 %v619, %v621
    %v623 = vrot.slane %v616, %v622
    %v624 = vcombine.low %v548, %v549
    %v626 = vunpack.c.l.s4 1983009808
    %v627 = vunpack.c.0.s8 %v626
    %v628 = vlaneseq
    %v629 = vshrl.u32 %v628, 7
    %v630 = vsub.s32 %v627, %v629
    %v631 = vrot.slane %v624, %v630
    %v632 = vcombine.low %v607, %v615
    %v634 = vunpack.c.l.s4 1934713408
    %v635 = vunpack.c.0.s8 %v634
    %v636 = vlaneseq
    %v637 = vshrl.u32 %v636, 7
    %v638 = vsub.s32 %v635, %v637
    %v639 = vrot.slane %v632, %v638
    %v640 = vcombine.low %v623, %v631
    %v642 = vunpack.c.l.s4 1934713408
    %v643 = vunpack.c.0.s8 %v642
    %v644 = vlaneseq
    %v645 = vshrl.u32 %v644, 7
    %v646 = vsub.s32 %v643, %v645
    %v647 = vrot.slane %v640, %v646
    %v648 = vcombine.low %v639, %v647
    %v649 = vcombine.high %v639, %v647
    %v652 = vpack.i.b16 %v648, %v598
    %v653 = vshrl.u32 %v598, 16
    %v654 = vshrl.u32 %v648, 16
    %v655 = vpack.i.b16 %v654, %v653
    %v658 = vpack.i.b16 %v649, %v599
    %v659 = vshrl.u32 %v599, 16
    %v660 = vshrl.u32 %v649, 16
    %v661 = vpack.i.b16 %v660, %v659
    %v662 = vpack.c.bf16 %v111, %v110
    %664 = vrot.lane.b32.xlu0 %v662, 120
    %v665 = vpop.permute.xlu0 %664
    %666 = vrot.lane.b32.xlu0 %v662, 112
    %v667 = vpop.permute.xlu0 %666
    %668 = vrot.lane.b32.xlu0 %v662, 104
    %v669 = vpop.permute.xlu0 %668
    %670 = vrot.lane.b32.xlu0 %v662, 64
    %v671 = vpop.permute.xlu0 %670
    %672 = vrot.lane.b32.xlu0 %v665, 64
    %v673 = vpop.permute.xlu0 %672
    %674 = vrot.lane.b32.xlu0 %v667, 64
    %v675 = vpop.permute.xlu0 %674
    %676 = vrot.lane.b32.xlu0 %v669, 64
    %v677 = vpop.permute.xlu0 %676
    %v680 = vpack.i.b16 %v673, %v671
    %v682 = vshrl.u32 %v671, 16
    %v683 = vshrl.u32 %v673, 16
    %v684 = vpack.i.b16 %v683, %v682
    %v688 = vpack.i.b16 %v677, %v675
    %v690 = vshrl.u32 %v675, 16
    %v691 = vshrl.u32 %v677, 16
    %v692 = vpack.i.b16 %v691, %v690
    %v694 = vcombine.high %v680, %v137
    %v696 = vunpack.c.l.s4 1983009808
    %v697 = vunpack.c.0.s8 %v696
    %v698 = vlaneseq
    %v699 = vshrl.u32 %v698, 7
    %v700 = vsub.s32 %v697, %v699
    %v701 = vrot.slane %v680, %v700
    %v703 = vunpack.c.l.s4 1983009808
    %v704 = vunpack.c.0.s8 %v703
    %v705 = vlaneseq
    %v706 = vshrl.u32 %v705, 7
    %v707 = vsub.s32 %v704, %v706
    %v708 = vrot.slane %v694, %v707
    %v709 = vcombine.high %v688, %v137
    %v711 = vunpack.c.l.s4 1983009808
    %v712 = vunpack.c.0.s8 %v711
    %v713 = vlaneseq
    %v714 = vshrl.u32 %v713, 7
    %v715 = vsub.s32 %v712, %v714
    %v716 = vrot.slane %v688, %v715
    %v718 = vunpack.c.l.s4 1983009808
    %v719 = vunpack.c.0.s8 %v718
    %v720 = vlaneseq
    %v721 = vshrl.u32 %v720, 7
    %v722 = vsub.s32 %v719, %v721
    %v723 = vrot.slane %v709, %v722
    %v724 = vcombine.low %v701, %v716
    %v725 = vcombine.high %v701, %v716
    %v727 = vunpack.c.l.s4 1934713408
    %v728 = vunpack.c.0.s8 %v727
    %v729 = vlaneseq
    %v730 = vshrl.u32 %v729, 7
    %v731 = vsub.s32 %v728, %v730
    %v732 = vrot.slane %v724, %v731
    %v734 = vunpack.c.l.s4 1934713408
    %v735 = vunpack.c.0.s8 %v734
    %v736 = vlaneseq
    %v737 = vshrl.u32 %v736, 7
    %v738 = vsub.s32 %v735, %v737
    %v739 = vrot.slane %v725, %v738
    %v740 = vcombine.low %v708, %v723
    %v741 = vcombine.high %v708, %v723
    %v743 = vunpack.c.l.s4 1934713408
    %v744 = vunpack.c.0.s8 %v743
    %v745 = vlaneseq
    %v746 = vshrl.u32 %v745, 7
    %v747 = vsub.s32 %v744, %v746
    %v748 = vrot.slane %v740, %v747
    %v750 = vunpack.c.l.s4 1934713408
    %v751 = vunpack.c.0.s8 %v750
    %v752 = vlaneseq
    %v753 = vshrl.u32 %v752, 7
    %v754 = vsub.s32 %v751, %v753
    %v755 = vrot.slane %v741, %v754
    %v756 = vcombine.high %v732, 0
    %v757 = vcombine.high %v739, 0
    %v758 = vcombine.high %v748, 0
    %v759 = vcombine.high %v755, 0
    %v760 = vcombine.high %v684, %v140
    %v762 = vunpack.c.l.s4 1983009808
    %v763 = vunpack.c.0.s8 %v762
    %v764 = vlaneseq
    %v765 = vshrl.u32 %v764, 7
    %v766 = vsub.s32 %v763, %v765
    %v767 = vrot.slane %v684, %v766
    %v769 = vunpack.c.l.s4 1983009808
    %v770 = vunpack.c.0.s8 %v769
    %v771 = vlaneseq
    %v772 = vshrl.u32 %v771, 7
    %v773 = vsub.s32 %v770, %v772
    %v774 = vrot.slane %v760, %v773
    %v775 = vcombine.high %v692, %v140
    %v777 = vunpack.c.l.s4 1983009808
    %v778 = vunpack.c.0.s8 %v777
    %v779 = vlaneseq
    %v780 = vshrl.u32 %v779, 7
    %v781 = vsub.s32 %v778, %v780
    %v782 = vrot.slane %v692, %v781
    %v784 = vunpack.c.l.s4 1983009808
    %v785 = vunpack.c.0.s8 %v784
    %v786 = vlaneseq
    %v787 = vshrl.u32 %v786, 7
    %v788 = vsub.s32 %v785, %v787
    %v789 = vrot.slane %v775, %v788
    %v790 = vcombine.low %v767, %v782
    %v791 = vcombine.high %v767, %v782
    %v793 = vunpack.c.l.s4 1934713408
    %v794 = vunpack.c.0.s8 %v793
    %v795 = vlaneseq
    %v796 = vshrl.u32 %v795, 7
    %v797 = vsub.s32 %v794, %v796
    %v798 = vrot.slane %v790, %v797
    %v800 = vunpack.c.l.s4 1934713408
    %v801 = vunpack.c.0.s8 %v800
    %v802 = vlaneseq
    %v803 = vshrl.u32 %v802, 7
    %v804 = vsub.s32 %v801, %v803
    %v805 = vrot.slane %v791, %v804
    %v806 = vcombine.low %v774, %v789
    %v807 = vcombine.high %v774, %v789
    %v809 = vunpack.c.l.s4 1934713408
    %v810 = vunpack.c.0.s8 %v809
    %v811 = vlaneseq
    %v812 = vshrl.u32 %v811, 7
    %v813 = vsub.s32 %v810, %v812
    %v814 = vrot.slane %v806, %v813
    %v816 = vunpack.c.l.s4 1934713408
    %v817 = vunpack.c.0.s8 %v816
    %v818 = vlaneseq
    %v819 = vshrl.u32 %v818, 7
    %v820 = vsub.s32 %v817, %v819
    %v821 = vrot.slane %v807, %v820
    %v822 = vcombine.high %v798, 0
    %v823 = vcombine.high %v805, 0
    %v824 = vcombine.high %v814, 0
    %v825 = vcombine.high %v821, 0
    %v826 = vcombine.low %v732, %v739
    %v828 = vunpack.c.l.s4 1983009808
    %v829 = vunpack.c.0.s8 %v828
    %v830 = vlaneseq
    %v831 = vshrl.u32 %v830, 7
    %v832 = vsub.s32 %v829, %v831
    %v833 = vrot.slane %v826, %v832
    %v834 = vcombine.low %v756, %v757
    %v836 = vunpack.c.l.s4 1983009808
    %v837 = vunpack.c.0.s8 %v836
    %v838 = vlaneseq
    %v839 = vshrl.u32 %v838, 7
    %v840 = vsub.s32 %v837, %v839
    %v841 = vrot.slane %v834, %v840
    %v842 = vcombine.low %v748, %v755
    %v844 = vunpack.c.l.s4 1983009808
    %v845 = vunpack.c.0.s8 %v844
    %v846 = vlaneseq
    %v847 = vshrl.u32 %v846, 7
    %v848 = vsub.s32 %v845, %v847
    %v849 = vrot.slane %v842, %v848
    %v850 = vcombine.low %v758, %v759
    %v852 = vunpack.c.l.s4 1983009808
    %v853 = vunpack.c.0.s8 %v852
    %v854 = vlaneseq
    %v855 = vshrl.u32 %v854, 7
    %v856 = vsub.s32 %v853, %v855
    %v857 = vrot.slane %v850, %v856
    %v858 = vcombine.low %v833, %v841
    %v860 = vunpack.c.l.s4 1934713408
    %v861 = vunpack.c.0.s8 %v860
    %v862 = vlaneseq
    %v863 = vshrl.u32 %v862, 7
    %v864 = vsub.s32 %v861, %v863
    %v865 = vrot.slane %v858, %v864
    %v866 = vcombine.low %v849, %v857
    %v868 = vunpack.c.l.s4 1934713408
    %v869 = vunpack.c.0.s8 %v868
    %v870 = vlaneseq
    %v871 = vshrl.u32 %v870, 7
    %v872 = vsub.s32 %v869, %v871
    %v873 = vrot.slane %v866, %v872
    %v874 = vcombine.low %v865, %v873
    %v875 = vcombine.high %v865, %v873
    %v876 = vcombine.low %v798, %v805
    %v878 = vunpack.c.l.s4 1983009808
    %v879 = vunpack.c.0.s8 %v878
    %v880 = vlaneseq
    %v881 = vshrl.u32 %v880, 7
    %v882 = vsub.s32 %v879, %v881
    %v883 = vrot.slane %v876, %v882
    %v884 = vcombine.low %v822, %v823
    %v886 = vunpack.c.l.s4 1983009808
    %v887 = vunpack.c.0.s8 %v886
    %v888 = vlaneseq
    %v889 = vshrl.u32 %v888, 7
    %v890 = vsub.s32 %v887, %v889
    %v891 = vrot.slane %v884, %v890
    %v892 = vcombine.low %v814, %v821
    %v894 = vunpack.c.l.s4 1983009808
    %v895 = vunpack.c.0.s8 %v894
    %v896 = vlaneseq
    %v897 = vshrl.u32 %v896, 7
    %v898 = vsub.s32 %v895, %v897
    %v899 = vrot.slane %v892, %v898
    %v900 = vcombine.low %v824, %v825
    %v902 = vunpack.c.l.s4 1983009808
    %v903 = vunpack.c.0.s8 %v902
    %v904 = vlaneseq
    %v905 = vshrl.u32 %v904, 7
    %v906 = vsub.s32 %v903, %v905
    %v907 = vrot.slane %v900, %v906
    %v908 = vcombine.low %v883, %v891
    %v910 = vunpack.c.l.s4 1934713408
    %v911 = vunpack.c.0.s8 %v910
    %v912 = vlaneseq
    %v913 = vshrl.u32 %v912, 7
    %v914 = vsub.s32 %v911, %v913
    %v915 = vrot.slane %v908, %v914
    %v916 = vcombine.low %v899, %v907
    %v918 = vunpack.c.l.s4 1934713408
    %v919 = vunpack.c.0.s8 %v918
    %v920 = vlaneseq
    %v921 = vshrl.u32 %v920, 7
    %v922 = vsub.s32 %v919, %v921
    %v923 = vrot.slane %v916, %v922
    %v924 = vcombine.low %v915, %v923
    %v925 = vcombine.high %v915, %v923
    %v928 = vpack.i.b16 %v924, %v874
    %v930 = vshrl.u32 %v874, 16
    %v931 = vshrl.u32 %v924, 16
    %v932 = vpack.i.b16 %v931, %v930
    %v936 = vpack.i.b16 %v925, %v875
    %v938 = vshrl.u32 %v875, 16
    %v939 = vshrl.u32 %v925, 16
    %v940 = vpack.i.b16 %v939, %v938
    %vm942 = vcmask 64512
    %v944 = vsel %vm942, %v376, 0
    %v947 = vsel %vm942, %v652, 0
    %949 = vmatprep.subr.bf16.mxu0 0
    %950 = vmatpush1.bf16.xpose.msra.mxu0 0
    %951 = vmatprep.subr.bf16.mxu0 0
    %952 = vmatpush1.bf16.xpose.msra.mxu0 0
    %953 = vmatprep.subr.bf16.mxu0 0
    %954 = vmatpush1.bf16.xpose.msra.mxu0 0
    %955 = vmatprep.subr.bf16.mxu0 0
    %956 = vmatpush1.bf16.xpose.msra.mxu0 0
    %957 = vmatprep.subr.bf16.mxu0 0
    %958 = vmatpush1.bf16.xpose.msra.mxu0 0
    %959 = vmatprep.subr.bf16.mxu0 0
    %960 = vmatpush1.bf16.xpose.msra.mxu0 0
    %961 = vmatprep.subr.bf16.mxu0 0
    %962 = vmatpush1.bf16.xpose.msra.mxu0 0
    %963 = vmatprep.subr.bf16.mxu0 0
    %964 = vmatpush1.bf16.xpose.msra.mxu0 %v947
    %965 = vmatprep.subr.bf16.mxu0 0
    %966 = vmatpush2.bf16.xpose.msra.mxu0 0
    %967 = vmatprep.subr.bf16.mxu0 0
    %968 = vmatpush2.bf16.xpose.msra.mxu0 0
    %969 = vmatprep.subr.bf16.mxu0 0
    %970 = vmatpush2.bf16.xpose.msra.mxu0 0
    %971 = vmatprep.subr.bf16.mxu0 0
    %972 = vmatpush2.bf16.xpose.msra.mxu0 0
    %973 = vmatprep.subr.bf16.mxu0 0
    %974 = vmatpush2.bf16.xpose.msra.mxu0 0
    %975 = vmatprep.subr.bf16.mxu0 0
    %976 = vmatpush2.bf16.xpose.msra.mxu0 0
    %977 = vmatprep.subr.bf16.mxu0 0
    %978 = vmatpush2.bf16.xpose.msra.mxu0 0
    %979 = vmatprep.subr.bf16.mxu0 0
    %980 = vmatpush2.bf16.xpose.msra.mxu0 0
    %981 = vmatprep.mubr.bf16.mxu0 0
    %982 = vmatmul.mubr.bf16.gmra.mxu0 %v944
    %v983 = vpop.f32.mrf.mxu0
    %v984 = vadd.f32 0.0, %v983
    %v985 = vpop.f32.mrf.mxu0
    %v986 = vpop.f32.mrf.mxu0
    %v987 = vadd.f32 0.0, %v986
    %v988 = vpop.f32.mrf.mxu0
    %989 = vdwg.mxu0
    %v991 = vsel %vm942, %v379, 0
    %v994 = vsel %vm942, %v655, 0
    %996 = vmatprep.subr.bf16.mxu0 0
    %997 = vmatpush1.bf16.xpose.msra.mxu0 0
    %998 = vmatprep.subr.bf16.mxu0 0
    %999 = vmatpush1.bf16.xpose.msra.mxu0 0
    %1000 = vmatprep.subr.bf16.mxu0 0
    %1001 = vmatpush1.bf16.xpose.msra.mxu0 0
    %1002 = vmatprep.subr.bf16.mxu0 0
    %1003 = vmatpush1.bf16.xpose.msra.mxu0 0
    %1004 = vmatprep.subr.bf16.mxu0 0
    %1005 = vmatpush1.bf16.xpose.msra.mxu0 0
    %1006 = vmatprep.subr.bf16.mxu0 0
    %1007 = vmatpush1.bf16.xpose.msra.mxu0 0
    %1008 = vmatprep.subr.bf16.mxu0 0
    %1009 = vmatpush1.bf16.xpose.msra.mxu0 0
    %1010 = vmatprep.subr.bf16.mxu0 0
    %1011 = vmatpush1.bf16.xpose.msra.mxu0 %v994
    %1012 = vmatprep.subr.bf16.mxu0 0
    %1013 = vmatpush2.bf16.xpose.msra.mxu0 0
    %1014 = vmatprep.subr.bf16.mxu0 0
    %1015 = vmatpush2.bf16.xpose.msra.mxu0 0
    %1016 = vmatprep.subr.bf16.mxu0 0
    %1017 = vmatpush2.bf16.xpose.msra.mxu0 0
    %1018 = vmatprep.subr.bf16.mxu0 0
    %1019 = vmatpush2.bf16.xpose.msra.mxu0 0
    %1020 = vmatprep.subr.bf16.mxu0 0
    %1021 = vmatpush2.bf16.xpose.msra.mxu0 0
    %1022 = vmatprep.subr.bf16.mxu0 0
    %1023 = vmatpush2.bf16.xpose.msra.mxu0 0
    %1024 = vmatprep.subr.bf16.mxu0 0
    %1025 = vmatpush2.bf16.xpose.msra.mxu0 0
    %1026 = vmatprep.subr.bf16.mxu0 0
    %1027 = vmatpush2.bf16.xpose.msra.mxu0 0
    %1028 = vmatprep.mubr.bf16.mxu0 0
    %1029 = vmatmul.mubr.bf16.gmra.mxu0 %v991
    %v1030 = vpop.f32.mrf.mxu0
    %v1031 = vadd.f32 0.0, %v1030
    %v1032 = vpop.f32.mrf.mxu0
    %v1033 = vpop.f32.mrf.mxu0
    %v1034 = vadd.f32 0.0, %v1033
    %v1035 = vpop.f32.mrf.mxu0
    %1036 = vdwg.mxu0
    %v1038 = vsel %vm942, %v382, 0
    %v1041 = vsel %vm942, %v658, 0
    %1043 = vmatprep.subr.bf16.mxu0 0
    %1044 = vmatpush1.bf16.xpose.msra.mxu0 0
    %1045 = vmatprep.subr.bf16.mxu0 0
    %1046 = vmatpush1.bf16.xpose.msra.mxu0 0
    %1047 = vmatprep.subr.bf16.mxu0 0
    %1048 = vmatpush1.bf16.xpose.msra.mxu0 0
    %1049 = vmatprep.subr.bf16.mxu0 0
    %1050 = vmatpush1.bf16.xpose.msra.mxu0 0
    %1051 = vmatprep.subr.bf16.mxu0 0
    %1052 = vmatpush1.bf16.xpose.msra.mxu0 0
    %1053 = vmatprep.subr.bf16.mxu0 0
    %1054 = vmatpush1.bf16.xpose.msra.mxu0 0
    %1055 = vmatprep.subr.bf16.mxu0 0
    %1056 = vmatpush1.bf16.xpose.msra.mxu0 0
    %1057 = vmatprep.subr.bf16.mxu0 0
    %1058 = vmatpush1.bf16.xpose.msra.mxu0 %v1041
    %1059 = vmatprep.subr.bf16.mxu0 0
    %1060 = vmatpush2.bf16.xpose.msra.mxu0 0
    %1061 = vmatprep.subr.bf16.mxu0 0
    %1062 = vmatpush2.bf16.xpose.msra.mxu0 0
    %1063 = vmatprep.subr.bf16.mxu0 0
    %1064 = vmatpush2.bf16.xpose.msra.mxu0 0
    %1065 = vmatprep.subr.bf16.mxu0 0
    %1066 = vmatpush2.bf16.xpose.msra.mxu0 0
    %1067 = vmatprep.subr.bf16.mxu0 0
    %1068 = vmatpush2.bf16.xpose.msra.mxu0 0
    %1069 = vmatprep.subr.bf16.mxu0 0
    %1070 = vmatpush2.bf16.xpose.msra.mxu0 0
    %1071 = vmatprep.subr.bf16.mxu0 0
    %1072 = vmatpush2.bf16.xpose.msra.mxu0 0
    %1073 = vmatprep.subr.bf16.mxu0 0
    %1074 = vmatpush2.bf16.xpose.msra.mxu0 0
    %1075 = vmatprep.mubr.bf16.mxu0 0
    %1076 = vmatmul.mubr.bf16.gmra.mxu0 %v1038
    %v1077 = vpop.f32.mrf.mxu0
    %v1078 = vadd.f32 0.0, %v1077
    %v1079 = vpop.f32.mrf.mxu0
    %v1080 = vpop.f32.mrf.mxu0
    %v1081 = vadd.f32 0.0, %v1080
    %v1082 = vpop.f32.mrf.mxu0
    %1083 = vdwg.mxu0
    %v1085 = vsel %vm942, %v385, 0
    %v1088 = vsel %vm942, %v661, 0
    %1090 = vmatprep.subr.bf16.mxu0 0
    %1091 = vmatpush1.bf16.xpose.msra.mxu0 0
    %1092 = vmatprep.subr.bf16.mxu0 0
    %1093 = vmatpush1.bf16.xpose.msra.mxu0 0
    %1094 = vmatprep.subr.bf16.mxu0 0
    %1095 = vmatpush1.bf16.xpose.msra.mxu0 0
    %1096 = vmatprep.subr.bf16.mxu0 0
    %1097 = vmatpush1.bf16.xpose.msra.mxu0 0
    %1098 = vmatprep.subr.bf16.mxu0 0
    %1099 = vmatpush1.bf16.xpose.msra.mxu0 0
    %1100 = vmatprep.subr.bf16.mxu0 0
    %1101 = vmatpush1.bf16.xpose.msra.mxu0 0
    %1102 = vmatprep.subr.bf16.mxu0 0
    %1103 = vmatpush1.bf16.xpose.msra.mxu0 0
    %1104 = vmatprep.subr.bf16.mxu0 0
    %1105 = vmatpush1.bf16.xpose.msra.mxu0 %v1088
    %1106 = vmatprep.subr.bf16.mxu0 0
    %1107 = vmatpush2.bf16.xpose.msra.mxu0 0
    %1108 = vmatprep.subr.bf16.mxu0 0
    %1109 = vmatpush2.bf16.xpose.msra.mxu0 0
    %1110 = vmatprep.subr.bf16.mxu0 0
    %1111 = vmatpush2.bf16.xpose.msra.mxu0 0
    %1112 = vmatprep.subr.bf16.mxu0 0
    %1113 = vmatpush2.bf16.xpose.msra.mxu0 0
    %1114 = vmatprep.subr.bf16.mxu0 0
    %1115 = vmatpush2.bf16.xpose.msra.mxu0 0
    %1116 = vmatprep.subr.bf16.mxu0 0
    %1117 = vmatpush2.bf16.xpose.msra.mxu0 0
    %1118 = vmatprep.subr.bf16.mxu0 0
    %1119 = vmatpush2.bf16.xpose.msra.mxu0 0
    %1120 = vmatprep.subr.bf16.mxu0 0
    %1121 = vmatpush2.bf16.xpose.msra.mxu0 0
    %1122 = vmatprep.mubr.bf16.mxu0 0
    %1123 = vmatmul.mubr.bf16.gmra.mxu0 %v1085
    %v1124 = vpop.f32.mrf.mxu0
    %v1125 = vadd.f32 0.0, %v1124
    %v1126 = vpop.f32.mrf.mxu0
    %v1127 = vpop.f32.mrf.mxu0
    %v1128 = vadd.f32 0.0, %v1127
    %v1129 = vpop.f32.mrf.mxu0
    %1130 = vdwg.mxu0
    %v1131 = vmul.f32 %v984, 0.35355338
    %v1132 = vmul.f32 %v987, 0.35355338
    %v1133 = vmul.f32 %v1031, 0.35355338
    %v1134 = vmul.f32 %v1034, 0.35355338
    %v1135 = vmul.f32 %v1078, 0.35355338
    %v1136 = vmul.f32 %v1081, 0.35355338
    %v1137 = vmul.f32 %v1125, 0.35355338
    %v1138 = vmul.f32 %v1128, 0.35355338
    %v1139 = vld [vmem:[%s1] sm:$0xff]
    %v1140 = vld [vmem:[%s1 + $0x8] sm:$0xff]
    %v1141 = vadd.f32 %v1131, %v1139
    %v1142 = vadd.f32 %v1132, %v1140
    %v1143 = vadd.f32 %v1133, %v1139
    %v1144 = vadd.f32 %v1134, %v1140
    %v1145 = vadd.f32 %v1135, %v1139
    %v1146 = vadd.f32 %v1136, %v1140
    %v1147 = vadd.f32 %v1137, %v1139
    %v1148 = vadd.f32 %v1138, %v1140
    %vm1149 = vcmask 130048
    %v1150 = vsel %vm1149, %v1141, -inf
    %1151 = vmax.xlane.f32.xlu0 %v1150
    %v1152 = vpop.xlane.xlu0 %1151
    %v1153 = vsel %vm1149, %v1142, -inf
    %1154 = vmax.xlane.f32.xlu0 %v1153
    %v1155 = vpop.xlane.xlu0 %1154
    %v1156 = vsel %vm1149, %v1143, -inf
    %1157 = vmax.xlane.f32.xlu0 %v1156
    %v1158 = vpop.xlane.xlu0 %1157
    %v1159 = vsel %vm1149, %v1144, -inf
    %1160 = vmax.xlane.f32.xlu0 %v1159
    %v1161 = vpop.xlane.xlu0 %1160
    %v1162 = vsel %vm1149, %v1145, -inf
    %1163 = vmax.xlane.f32.xlu0 %v1162
    %v1164 = vpop.xlane.xlu0 %1163
    %v1165 = vsel %vm1149, %v1146, -inf
    %1166 = vmax.xlane.f32.xlu0 %v1165
    %v1167 = vpop.xlane.xlu0 %1166
    %v1168 = vsel %vm1149, %v1147, -inf
    %1169 = vmax.xlane.f32.xlu0 %v1168
    %v1170 = vpop.xlane.xlu0 %1169
    %v1171 = vsel %vm1149, %v1148, -inf
    %1172 = vmax.xlane.f32.xlu0 %v1171
    %v1173 = vpop.xlane.xlu0 %1172
    %v1174 = vsub.f32 %v1141, %v1152
    %v1175 = vsub.f32 %v1142, %v1155
    %v1176 = vsub.f32 %v1143, %v1158
    %v1177 = vsub.f32 %v1144, %v1161
    %v1178 = vsub.f32 %v1145, %v1164
    %v1179 = vsub.f32 %v1146, %v1167
    %v1180 = vsub.f32 %v1147, %v1170
    %v1181 = vsub.f32 %v1148, %v1173
    %v1182 = vmul.f32 %v1174, 1.442695
    %v1183 = vpow.pop %v1182
    %v1184 = vmul.f32 %v1175, 1.442695
    %v1185 = vpow.pop %v1184
    %v1186 = vmul.f32 %v1176, 1.442695
    %v1187 = vpow.pop %v1186
    %v1188 = vmul.f32 %v1177, 1.442695
    %v1189 = vpow.pop %v1188
    %v1190 = vmul.f32 %v1178, 1.442695
    %v1191 = vpow.pop %v1190
    %v1192 = vmul.f32 %v1179, 1.442695
    %v1193 = vpow.pop %v1192
    %v1194 = vmul.f32 %v1180, 1.442695
    %v1195 = vpow.pop %v1194
    %v1196 = vmul.f32 %v1181, 1.442695
    %v1197 = vpow.pop %v1196
    %v1198 = vsel %vm1149, %v1183, 0.0
    %1199 = vadd.xlane.f32.xlu0 %v1198
    %v1200 = vpop.xlane.xlu0 %1199
    %v1201 = vsel %vm1149, %v1185, 0.0
    %1202 = vadd.xlane.f32.xlu0 %v1201
    %v1203 = vpop.xlane.xlu0 %1202
    %v1204 = vsel %vm1149, %v1187, 0.0
    %1205 = vadd.xlane.f32.xlu0 %v1204
    %v1206 = vpop.xlane.xlu0 %1205
    %v1207 = vsel %vm1149, %v1189, 0.0
    %1208 = vadd.xlane.f32.xlu0 %v1207
    %v1209 = vpop.xlane.xlu0 %1208
    %v1210 = vsel %vm1149, %v1191, 0.0
    %1211 = vadd.xlane.f32.xlu0 %v1210
    %v1212 = vpop.xlane.xlu0 %1211
    %v1213 = vsel %vm1149, %v1193, 0.0
    %1214 = vadd.xlane.f32.xlu0 %v1213
    %v1215 = vpop.xlane.xlu0 %1214
    %v1216 = vsel %vm1149, %v1195, 0.0
    %1217 = vadd.xlane.f32.xlu0 %v1216
    %v1218 = vpop.xlane.xlu0 %1217
    %v1219 = vsel %vm1149, %v1197, 0.0
    %1220 = vadd.xlane.f32.xlu0 %v1219
    %v1221 = vpop.xlane.xlu0 %1220
    %v1222 = vrcp.pop %v1200
    %v1223 = vrcp.pop %v1203
    %v1224 = vrcp.pop %v1206
    %v1225 = vrcp.pop %v1209
    %v1226 = vrcp.pop %v1212
    %v1227 = vrcp.pop %v1215
    %v1228 = vrcp.pop %v1218
    %v1229 = vrcp.pop %v1221
    %v1230 = vmul.f32 %v1183, %v1222
    %v1231 = vmul.f32 %v1185, %v1223
    %v1232 = vmul.f32 %v1187, %v1224
    %v1233 = vmul.f32 %v1189, %v1225
    %v1234 = vmul.f32 %v1191, %v1226
    %v1235 = vmul.f32 %v1193, %v1227
    %v1236 = vmul.f32 %v1195, %v1228
    %v1237 = vmul.f32 %v1197, %v1229
    %v1238 = vpack.c.bf16 %v1231, %v1230
    %v1239 = vpack.c.bf16 %v1233, %v1232
    %v1240 = vpack.c.bf16 %v1235, %v1234
    %v1241 = vpack.c.bf16 %v1237, %v1236
    %v1243 = vsel %vm1149, %v1238, 0
    %1245 = vmatprep.subr.bf16.mxu0 0
    %1246 = vmatpush1.bf16.msra.mxu0 0
    %1247 = vmatprep.subr.bf16.mxu0 0
    %1248 = vmatpush1.bf16.msra.mxu0 0
    %1249 = vmatprep.subr.bf16.mxu0 0
    %1250 = vmatpush1.bf16.msra.mxu0 0
    %1251 = vmatprep.subr.bf16.mxu0 0
    %1252 = vmatpush1.bf16.msra.mxu0 0
    %1253 = vmatprep.subr.bf16.mxu0 0
    %1254 = vmatpush1.bf16.msra.mxu0 0
    %1255 = vmatprep.subr.bf16.mxu0 0
    %1256 = vmatpush1.bf16.msra.mxu0 0
    %1257 = vmatprep.subr.bf16.mxu0 0
    %1258 = vmatpush1.bf16.msra.mxu0 0
    %1259 = vmatprep.subr.bf16.mxu0 0
    %1260 = vmatpush1.bf16.msra.mxu0 %v928
    %1261 = vmatprep.subr.bf16.mxu0 0
    %1262 = vmatpush2.bf16.msra.mxu0 0
    %1263 = vmatprep.subr.bf16.mxu0 0
    %1264 = vmatpush2.bf16.msra.mxu0 0
    %1265 = vmatprep.subr.bf16.mxu0 0
    %1266 = vmatpush2.bf16.msra.mxu0 0
    %1267 = vmatprep.subr.bf16.mxu0 0
    %1268 = vmatpush2.bf16.msra.mxu0 0
    %1269 = vmatprep.subr.bf16.mxu0 0
    %1270 = vmatpush2.bf16.msra.mxu0 0
    %1271 = vmatprep.subr.bf16.mxu0 0
    %1272 = vmatpush2.bf16.msra.mxu0 0
    %1273 = vmatprep.subr.bf16.mxu0 0
    %1274 = vmatpush2.bf16.msra.mxu0 0
    %1275 = vmatprep.subr.bf16.mxu0 0
    %1276 = vmatpush2.bf16.msra.mxu0 0
    %1277 = vmatprep.mubr.bf16.mxu0 0
    %1278 = vmatmul.mubr.bf16.gmra.mxu0 %v1243
    %v1279 = vpop.f32.mrf.mxu0
    %v1280 = vadd.f32 0.0, %v1279
    %v1281 = vpop.f32.mrf.mxu0
    %v1282 = vpop.f32.mrf.mxu0
    %v1283 = vadd.f32 0.0, %v1282
    %v1284 = vpop.f32.mrf.mxu0
    %1285 = vdwg.mxu0
    %v1287 = vsel %vm1149, %v1239, 0
    %1289 = vmatprep.subr.bf16.mxu0 0
    %1290 = vmatpush1.bf16.msra.mxu0 0
    %1291 = vmatprep.subr.bf16.mxu0 0
    %1292 = vmatpush1.bf16.msra.mxu0 0
    %1293 = vmatprep.subr.bf16.mxu0 0
    %1294 = vmatpush1.bf16.msra.mxu0 0
    %1295 = vmatprep.subr.bf16.mxu0 0
    %1296 = vmatpush1.bf16.msra.mxu0 0
    %1297 = vmatprep.subr.bf16.mxu0 0
    %1298 = vmatpush1.bf16.msra.mxu0 0
    %1299 = vmatprep.subr.bf16.mxu0 0
    %1300 = vmatpush1.bf16.msra.mxu0 0
    %1301 = vmatprep.subr.bf16.mxu0 0
    %1302 = vmatpush1.bf16.msra.mxu0 0
    %1303 = vmatprep.subr.bf16.mxu0 0
    %1304 = vmatpush1.bf16.msra.mxu0 %v932
    %1305 = vmatprep.subr.bf16.mxu0 0
    %1306 = vmatpush2.bf16.msra.mxu0 0
    %1307 = vmatprep.subr.bf16.mxu0 0
    %1308 = vmatpush2.bf16.msra.mxu0 0
    %1309 = vmatprep.subr.bf16.mxu0 0
    %1310 = vmatpush2.bf16.msra.mxu0 0
    %1311 = vmatprep.subr.bf16.mxu0 0
    %1312 = vmatpush2.bf16.msra.mxu0 0
    %1313 = vmatprep.subr.bf16.mxu0 0
    %1314 = vmatpush2.bf16.msra.mxu0 0
    %1315 = vmatprep.subr.bf16.mxu0 0
    %1316 = vmatpush2.bf16.msra.mxu0 0
    %1317 = vmatprep.subr.bf16.mxu0 0
    %1318 = vmatpush2.bf16.msra.mxu0 0
    %1319 = vmatprep.subr.bf16.mxu0 0
    %1320 = vmatpush2.bf16.msra.mxu0 0
    %1321 = vmatprep.mubr.bf16.mxu0 0
    %1322 = vmatmul.mubr.bf16.gmra.mxu0 %v1287
    %v1323 = vpop.f32.mrf.mxu0
    %v1324 = vadd.f32 0.0, %v1323
    %v1325 = vpop.f32.mrf.mxu0
    %v1326 = vpop.f32.mrf.mxu0
    %v1327 = vadd.f32 0.0, %v1326
    %v1328 = vpop.f32.mrf.mxu0
    %1329 = vdwg.mxu0
    %v1331 = vsel %vm1149, %v1240, 0
    %1333 = vmatprep.subr.bf16.mxu0 0
    %1334 = vmatpush1.bf16.msra.mxu0 0
    %1335 = vmatprep.subr.bf16.mxu0 0
    %1336 = vmatpush1.bf16.msra.mxu0 0
    %1337 = vmatprep.subr.bf16.mxu0 0
    %1338 = vmatpush1.bf16.msra.mxu0 0
    %1339 = vmatprep.subr.bf16.mxu0 0
    %1340 = vmatpush1.bf16.msra.mxu0 0
    %1341 = vmatprep.subr.bf16.mxu0 0
    %1342 = vmatpush1.bf16.msra.mxu0 0
    %1343 = vmatprep.subr.bf16.mxu0 0
    %1344 = vmatpush1.bf16.msra.mxu0 0
    %1345 = vmatprep.subr.bf16.mxu0 0
    %1346 = vmatpush1.bf16.msra.mxu0 0
    %1347 = vmatprep.subr.bf16.mxu0 0
    %1348 = vmatpush1.bf16.msra.mxu0 %v936
    %1349 = vmatprep.subr.bf16.mxu0 0
    %1350 = vmatpush2.bf16.msra.mxu0 0
    %1351 = vmatprep.subr.bf16.mxu0 0
    %1352 = vmatpush2.bf16.msra.mxu0 0
    %1353 = vmatprep.subr.bf16.mxu0 0
    %1354 = vmatpush2.bf16.msra.mxu0 0
    %1355 = vmatprep.subr.bf16.mxu0 0
    %1356 = vmatpush2.bf16.msra.mxu0 0
    %1357 = vmatprep.subr.bf16.mxu0 0
    %1358 = vmatpush2.bf16.msra.mxu0 0
    %1359 = vmatprep.subr.bf16.mxu0 0
    %1360 = vmatpush2.bf16.msra.mxu0 0
    %1361 = vmatprep.subr.bf16.mxu0 0
    %1362 = vmatpush2.bf16.msra.mxu0 0
    %1363 = vmatprep.subr.bf16.mxu0 0
    %1364 = vmatpush2.bf16.msra.mxu0 0
    %1365 = vmatprep.mubr.bf16.mxu0 0
    %1366 = vmatmul.mubr.bf16.gmra.mxu0 %v1331
    %v1367 = vpop.f32.mrf.mxu0
    %v1368 = vadd.f32 0.0, %v1367
    %v1369 = vpop.f32.mrf.mxu0
    %v1370 = vpop.f32.mrf.mxu0
    %v1371 = vadd.f32 0.0, %v1370
    %v1372 = vpop.f32.mrf.mxu0
    %1373 = vdwg.mxu0
    %v1375 = vsel %vm1149, %v1241, 0
    %1377 = vmatprep.subr.bf16.mxu0 0
    %1378 = vmatpush1.bf16.msra.mxu0 0
    %1379 = vmatprep.subr.bf16.mxu0 0
    %1380 = vmatpush1.bf16.msra.mxu0 0
    %1381 = vmatprep.subr.bf16.mxu0 0
    %1382 = vmatpush1.bf16.msra.mxu0 0
    %1383 = vmatprep.subr.bf16.mxu0 0
    %1384 = vmatpush1.bf16.msra.mxu0 0
    %1385 = vmatprep.subr.bf16.mxu0 0
    %1386 = vmatpush1.bf16.msra.mxu0 0
    %1387 = vmatprep.subr.bf16.mxu0 0
    %1388 = vmatpush1.bf16.msra.mxu0 0
    %1389 = vmatprep.subr.bf16.mxu0 0
    %1390 = vmatpush1.bf16.msra.mxu0 0
    %1391 = vmatprep.subr.bf16.mxu0 0
    %1392 = vmatpush1.bf16.msra.mxu0 %v940
    %1393 = vmatprep.subr.bf16.mxu0 0
    %1394 = vmatpush2.bf16.msra.mxu0 0
    %1395 = vmatprep.subr.bf16.mxu0 0
    %1396 = vmatpush2.bf16.msra.mxu0 0
    %1397 = vmatprep.subr.bf16.mxu0 0
    %1398 = vmatpush2.bf16.msra.mxu0 0
    %1399 = vmatprep.subr.bf16.mxu0 0
    %1400 = vmatpush2.bf16.msra.mxu0 0
    %1401 = vmatprep.subr.bf16.mxu0 0
    %1402 = vmatpush2.bf16.msra.mxu0 0
    %1403 = vmatprep.subr.bf16.mxu0 0
    %1404 = vmatpush2.bf16.msra.mxu0 0
    %1405 = vmatprep.subr.bf16.mxu0 0
    %1406 = vmatpush2.bf16.msra.mxu0 0
    %1407 = vmatprep.subr.bf16.mxu0 0
    %1408 = vmatpush2.bf16.msra.mxu0 0
    %1409 = vmatprep.mubr.bf16.mxu0 0
    %1410 = vmatmul.mubr.bf16.gmra.mxu0 %v1375
    %v1411 = vpop.f32.mrf.mxu0
    %v1412 = vadd.f32 0.0, %v1411
    %v1413 = vpop.f32.mrf.mxu0
    %v1414 = vpop.f32.mrf.mxu0
    %v1415 = vadd.f32 0.0, %v1414
    %v1416 = vpop.f32.mrf.mxu0
    %1417 = vdwg.mxu0
    %v1418 = vcombine.low %v1280, %v1368
    %v1419 = vcombine.high %v1280, %v1368
    %v1421 = vunpack.c.l.s4 1983009808
    %v1422 = vunpack.c.0.s8 %v1421
    %v1423 = vlaneseq
    %v1424 = vshrl.u32 %v1423, 7
    %v1425 = vsub.s32 %v1422, %v1424
    %v1426 = vrot.slane %v1418, %v1425
    %v1428 = vunpack.c.l.s4 1983009808
    %v1429 = vunpack.c.0.s8 %v1428
    %v1430 = vlaneseq
    %v1431 = vshrl.u32 %v1430, 7
    %v1432 = vsub.s32 %v1429, %v1431
    %v1433 = vrot.slane %v1419, %v1432
    %v1434 = vcombine.low %v1324, %v1412
    %v1435 = vcombine.high %v1324, %v1412
    %v1437 = vunpack.c.l.s4 1983009808
    %v1438 = vunpack.c.0.s8 %v1437
    %v1439 = vlaneseq
    %v1440 = vshrl.u32 %v1439, 7
    %v1441 = vsub.s32 %v1438, %v1440
    %v1442 = vrot.slane %v1434, %v1441
    %v1444 = vunpack.c.l.s4 1983009808
    %v1445 = vunpack.c.0.s8 %v1444
    %v1446 = vlaneseq
    %v1447 = vshrl.u32 %v1446, 7
    %v1448 = vsub.s32 %v1445, %v1447
    %v1449 = vrot.slane %v1435, %v1448
    %v1450 = vcombine.low %v1426, %v1442
    %v1451 = vcombine.high %v1426, %v1442
    %v1453 = vunpack.c.l.s4 1934713408
    %v1454 = vunpack.c.0.s8 %v1453
    %v1455 = vlaneseq
    %v1456 = vshrl.u32 %v1455, 7
    %v1457 = vsub.s32 %v1454, %v1456
    %v1458 = vrot.slane %v1450, %v1457
    %v1460 = vunpack.c.l.s4 1934713408
    %v1461 = vunpack.c.0.s8 %v1460
    %v1462 = vlaneseq
    %v1463 = vshrl.u32 %v1462, 7
    %v1464 = vsub.s32 %v1461, %v1463
    %v1465 = vrot.slane %v1451, %v1464
    %v1466 = vcombine.low %v1433, %v1449
    %v1467 = vcombine.high %v1433, %v1449
    %v1469 = vunpack.c.l.s4 1934713408
    %v1470 = vunpack.c.0.s8 %v1469
    %v1471 = vlaneseq
    %v1472 = vshrl.u32 %v1471, 7
    %v1473 = vsub.s32 %v1470, %v1472
    %v1474 = vrot.slane %v1466, %v1473
    %v1476 = vunpack.c.l.s4 1934713408
    %v1477 = vunpack.c.0.s8 %v1476
    %v1478 = vlaneseq
    %v1479 = vshrl.u32 %v1478, 7
    %v1480 = vsub.s32 %v1477, %v1479
    %v1481 = vrot.slane %v1467, %v1480
    %v1482 = vcombine.high %v1458, 0.0
    %v1483 = vcombine.high %v1465, 0.0
    %v1484 = vcombine.high %v1474, 0.0
    %v1485 = vcombine.high %v1481, 0.0
    %v1486 = vcombine.low %v1283, %v1371
    %v1487 = vcombine.high %v1283, %v1371
    %v1489 = vunpack.c.l.s4 1983009808
    %v1490 = vunpack.c.0.s8 %v1489
    %v1491 = vlaneseq
    %v1492 = vshrl.u32 %v1491, 7
    %v1493 = vsub.s32 %v1490, %v1492
    %v1494 = vrot.slane %v1486, %v1493
    %v1496 = vunpack.c.l.s4 1983009808
    %v1497 = vunpack.c.0.s8 %v1496
    %v1498 = vlaneseq
    %v1499 = vshrl.u32 %v1498, 7
    %v1500 = vsub.s32 %v1497, %v1499
    %v1501 = vrot.slane %v1487, %v1500
    %v1502 = vcombine.low %v1327, %v1415
    %v1503 = vcombine.high %v1327, %v1415
    %v1505 = vunpack.c.l.s4 1983009808
    %v1506 = vunpack.c.0.s8 %v1505
    %v1507 = vlaneseq
    %v1508 = vshrl.u32 %v1507, 7
    %v1509 = vsub.s32 %v1506, %v1508
    %v1510 = vrot.slane %v1502, %v1509
    %v1512 = vunpack.c.l.s4 1983009808
    %v1513 = vunpack.c.0.s8 %v1512
    %v1514 = vlaneseq
    %v1515 = vshrl.u32 %v1514, 7
    %v1516 = vsub.s32 %v1513, %v1515
    %v1517 = vrot.slane %v1503, %v1516
    %v1518 = vcombine.low %v1494, %v1510
    %v1519 = vcombine.high %v1494, %v1510
    %v1521 = vunpack.c.l.s4 1934713408
    %v1522 = vunpack.c.0.s8 %v1521
    %v1523 = vlaneseq
    %v1524 = vshrl.u32 %v1523, 7
    %v1525 = vsub.s32 %v1522, %v1524
    %v1526 = vrot.slane %v1518, %v1525
    %v1528 = vunpack.c.l.s4 1934713408
    %v1529 = vunpack.c.0.s8 %v1528
    %v1530 = vlaneseq
    %v1531 = vshrl.u32 %v1530, 7
    %v1532 = vsub.s32 %v1529, %v1531
    %v1533 = vrot.slane %v1519, %v1532
    %v1534 = vcombine.low %v1501, %v1517
    %v1535 = vcombine.high %v1501, %v1517
    %v1537 = vunpack.c.l.s4 1934713408
    %v1538 = vunpack.c.0.s8 %v1537
    %v1539 = vlaneseq
    %v1540 = vshrl.u32 %v1539, 7
    %v1541 = vsub.s32 %v1538, %v1540
    %v1542 = vrot.slane %v1534, %v1541
    %v1544 = vunpack.c.l.s4 1934713408
    %v1545 = vunpack.c.0.s8 %v1544
    %v1546 = vlaneseq
    %v1547 = vshrl.u32 %v1546, 7
    %v1548 = vsub.s32 %v1545, %v1547
    %v1549 = vrot.slane %v1535, %v1548
    %v1550 = vcombine.high %v1526, 0.0
    %v1551 = vcombine.high %v1533, 0.0
    %v1552 = vcombine.high %v1542, 0.0
    %v1553 = vcombine.high %v1549, 0.0
    %v1554 = vcombine.low %v1458, %v1465
    %v1556 = vunpack.c.l.s4 1983009808
    %v1557 = vunpack.c.0.s8 %v1556
    %v1558 = vlaneseq
    %v1559 = vshrl.u32 %v1558, 7
    %v1560 = vsub.s32 %v1557, %v1559
    %v1561 = vrot.slane %v1554, %v1560
    %v1562 = vcombine.low %v1482, %v1483
    %v1564 = vunpack.c.l.s4 1983009808
    %v1565 = vunpack.c.0.s8 %v1564
    %v1566 = vlaneseq
    %v1567 = vshrl.u32 %v1566, 7
    %v1568 = vsub.s32 %v1565, %v1567
    %v1569 = vrot.slane %v1562, %v1568
    %v1570 = vcombine.low %v1474, %v1481
    %v1572 = vunpack.c.l.s4 1983009808
    %v1573 = vunpack.c.0.s8 %v1572
    %v1574 = vlaneseq
    %v1575 = vshrl.u32 %v1574, 7
    %v1576 = vsub.s32 %v1573, %v1575
    %v1577 = vrot.slane %v1570, %v1576
    %v1578 = vcombine.low %v1484, %v1485
    %v1580 = vunpack.c.l.s4 1983009808
    %v1581 = vunpack.c.0.s8 %v1580
    %v1582 = vlaneseq
    %v1583 = vshrl.u32 %v1582, 7
    %v1584 = vsub.s32 %v1581, %v1583
    %v1585 = vrot.slane %v1578, %v1584
    %v1586 = vcombine.low %v1561, %v1569
    %v1587 = vcombine.high %v1561, %v1569
    %v1589 = vunpack.c.l.s4 1934713408
    %v1590 = vunpack.c.0.s8 %v1589
    %v1591 = vlaneseq
    %v1592 = vshrl.u32 %v1591, 7
    %v1593 = vsub.s32 %v1590, %v1592
    %v1594 = vrot.slane %v1586, %v1593
    %v1596 = vunpack.c.l.s4 1934713408
    %v1597 = vunpack.c.0.s8 %v1596
    %v1598 = vlaneseq
    %v1599 = vshrl.u32 %v1598, 7
    %v1600 = vsub.s32 %v1597, %v1599
    %v1601 = vrot.slane %v1587, %v1600
    %v1602 = vcombine.low %v1577, %v1585
    %v1603 = vcombine.high %v1577, %v1585
    %v1605 = vunpack.c.l.s4 1934713408
    %v1606 = vunpack.c.0.s8 %v1605
    %v1607 = vlaneseq
    %v1608 = vshrl.u32 %v1607, 7
    %v1609 = vsub.s32 %v1606, %v1608
    %v1610 = vrot.slane %v1602, %v1609
    %v1612 = vunpack.c.l.s4 1934713408
    %v1613 = vunpack.c.0.s8 %v1612
    %v1614 = vlaneseq
    %v1615 = vshrl.u32 %v1614, 7
    %v1616 = vsub.s32 %v1613, %v1615
    %v1617 = vrot.slane %v1603, %v1616
    %v1618 = vcombine.low %v1594, %v1610
    %v1619 = vcombine.high %v1594, %v1610
    %v1620 = vcombine.low %v1601, %v1617
    %v1621 = vcombine.high %v1601, %v1617
    %v1622 = vcombine.low %v1526, %v1533
    %v1624 = vunpack.c.l.s4 1983009808
    %v1625 = vunpack.c.0.s8 %v1624
    %v1626 = vlaneseq
    %v1627 = vshrl.u32 %v1626, 7
    %v1628 = vsub.s32 %v1625, %v1627
    %v1629 = vrot.slane %v1622, %v1628
    %v1630 = vcombine.low %v1550, %v1551
    %v1632 = vunpack.c.l.s4 1983009808
    %v1633 = vunpack.c.0.s8 %v1632
    %v1634 = vlaneseq
    %v1635 = vshrl.u32 %v1634, 7
    %v1636 = vsub.s32 %v1633, %v1635
    %v1637 = vrot.slane %v1630, %v1636
    %v1638 = vcombine.low %v1542, %v1549
    %v1640 = vunpack.c.l.s4 1983009808
    %v1641 = vunpack.c.0.s8 %v1640
    %v1642 = vlaneseq
    %v1643 = vshrl.u32 %v1642, 7
    %v1644 = vsub.s32 %v1641, %v1643
    %v1645 = vrot.slane %v1638, %v1644
    %v1646 = vcombine.low %v1552, %v1553
    %v1648 = vunpack.c.l.s4 1983009808
    %v1649 = vunpack.c.0.s8 %v1648
    %v1650 = vlaneseq
    %v1651 = vshrl.u32 %v1650, 7
    %v1652 = vsub.s32 %v1649, %v1651
    %v1653 = vrot.slane %v1646, %v1652
    %v1654 = vcombine.low %v1629, %v1637
    %v1655 = vcombine.high %v1629, %v1637
    %v1657 = vunpack.c.l.s4 1934713408
    %v1658 = vunpack.c.0.s8 %v1657
    %v1659 = vlaneseq
    %v1660 = vshrl.u32 %v1659, 7
    %v1661 = vsub.s32 %v1658, %v1660
    %v1662 = vrot.slane %v1654, %v1661
    %v1664 = vunpack.c.l.s4 1934713408
    %v1665 = vunpack.c.0.s8 %v1664
    %v1666 = vlaneseq
    %v1667 = vshrl.u32 %v1666, 7
    %v1668 = vsub.s32 %v1665, %v1667
    %v1669 = vrot.slane %v1655, %v1668
    %v1670 = vcombine.low %v1645, %v1653
    %v1671 = vcombine.high %v1645, %v1653
    %v1673 = vunpack.c.l.s4 1934713408
    %v1674 = vunpack.c.0.s8 %v1673
    %v1675 = vlaneseq
    %v1676 = vshrl.u32 %v1675, 7
    %v1677 = vsub.s32 %v1674, %v1676
    %v1678 = vrot.slane %v1670, %v1677
    %v1680 = vunpack.c.l.s4 1934713408
    %v1681 = vunpack.c.0.s8 %v1680
    %v1682 = vlaneseq
    %v1683 = vshrl.u32 %v1682, 7
    %v1684 = vsub.s32 %v1681, %v1683
    %v1685 = vrot.slane %v1671, %v1684
    %v1686 = vcombine.low %v1662, %v1678
    %v1687 = vcombine.high %v1662, %v1678
    %v1688 = vcombine.low %v1669, %v1685
    %v1689 = vcombine.high %v1669, %v1685
    %1692 = vrot.lane.b32.xlu0 %v1619, 8
    %v1693 = vpop.permute.xlu0 %1692
    %1694 = vrot.lane.b32.xlu0 %v1687, 8
    %v1695 = vpop.permute.xlu0 %1694
    %1700 = vrot.lane.b32.xlu0 %v1620, 16
    %v1701 = vpop.permute.xlu0 %1700
    %1702 = vrot.lane.b32.xlu0 %v1688, 16
    %v1703 = vpop.permute.xlu0 %1702
    %1708 = vrot.lane.b32.xlu0 %v1621, 24
    %v1709 = vpop.permute.xlu0 %1708
    %1710 = vrot.lane.b32.xlu0 %v1689, 24
    %v1711 = vpop.permute.xlu0 %1710
    %v1714 = vsel %vm942, %v1618, %v1693
    %v1715 = vsel %vm942, %v1686, %v1695
    %v1716 = vsel %vm1149, %v1714, %v1701
    %v1717 = vsel %vm1149, %v1715, %v1703
    %vm1718 = vcmask 195584
    %v1719 = vsel %vm1718, %v1716, %v1709
    %v1720 = vsel %vm1718, %v1717, %v1711
    %v1721 = vld [vmem:[%s2 + $0x10] sm:$0xf]
    %v1722 = vld [vmem:[%s2 + $0x14] sm:$0xf]
    %v1723 = vld [vmem:[%s2 + $0x18] sm:$0xf]
    %v1724 = vld [vmem:[%s2 + $0x1c] sm:$0xf]
    %v1725 = vpack.c.bf16 %v1720, %v1719
    %v1726 = vld [vmem:[%s3 + $0x3] sm:$0x1]
    %v1727 = vlaneseq
    %v1728 = vshrl.u32 %v1727, 7
    %v1729 = vsub.s32 0, %v1728
    %v1730 = vrot.slane %v1726, %v1729
    %v1735 = vunpack.c.l.b16 %v1721
    %v1736 = vunpack.c.l.b16 %v1722
    %v1737 = vunpack.c.l.b16 %v1723
    %v1738 = vunpack.c.l.b16 %v1724
    %v1739 = vpack.c.b16 %v1736, %v1735
    %v1740 = vpack.c.b16 %v1738, %v1737
    %v1744 = vsel %vm38, %v1725, 0
    %1746 = vmatprep.subr.bf16.mxu0 0
    %1747 = vmatpush1.bf16.msra.mxu0 0
    %1748 = vmatprep.subr.bf16.mxu0 0
    %1749 = vmatpush1.bf16.msra.mxu0 0
    %1750 = vmatprep.subr.bf16.mxu0 0
    %1751 = vmatpush1.bf16.msra.mxu0 0
    %1752 = vmatprep.subr.bf16.mxu0 0
    %1753 = vmatpush1.bf16.msra.mxu0 0
    %1754 = vmatprep.subr.bf16.mxu0 0
    %1755 = vmatpush1.bf16.msra.mxu0 0
    %1756 = vmatprep.subr.bf16.mxu0 0
    %1757 = vmatpush1.bf16.msra.mxu0 0
    %1758 = vmatprep.subr.bf16.mxu0 0
    %1759 = vmatpush1.bf16.msra.mxu0 %v1740
    %1760 = vmatprep.subr.bf16.mxu0 0
    %1761 = vmatpush1.bf16.msra.mxu0 %v1739
    %1762 = vmatprep.subr.bf16.mxu0 0
    %1763 = vmatpush2.bf16.msra.mxu0 0
    %1764 = vmatprep.subr.bf16.mxu0 0
    %1765 = vmatpush2.bf16.msra.mxu0 0
    %1766 = vmatprep.subr.bf16.mxu0 0
    %1767 = vmatpush2.bf16.msra.mxu0 0
    %1768 = vmatprep.subr.bf16.mxu0 0
    %1769 = vmatpush2.bf16.msra.mxu0 0
    %1770 = vmatprep.subr.bf16.mxu0 0
    %1771 = vmatpush2.bf16.msra.mxu0 0
    %1772 = vmatprep.subr.bf16.mxu0 0
    %1773 = vmatpush2.bf16.msra.mxu0 0
    %1774 = vmatprep.subr.bf16.mxu0 0
    %1775 = vmatpush2.bf16.msra.mxu0 0
    %1776 = vmatprep.subr.bf16.mxu0 0
    %1777 = vmatpush2.bf16.msra.mxu0 0
    %1778 = vmatprep.mubr.bf16.mxu0 0
    %1779 = vmatmul.mubr.bf16.gmra.mxu0 %v1744
    %v1780 = vpop.f32.mrf.mxu0
    %v1781 = vadd.f32 %v1730, %v1780
    %v1782 = vpop.f32.mrf.mxu0
    %v1783 = vpop.f32.mrf.mxu0
    %v1784 = vadd.f32 %v1730, %v1783
    %v1785 = vpop.f32.mrf.mxu0
    %1786 = vdwg.mxu0
    %v1787 = vadd.f32 %v19, %v1781
    %v1788 = vadd.f32 %v20, %v1784
    %v1789 = vld [vmem:[%s3 + $0x4] sm:$0x1]
    %v1790 = vld [vmem:[%s3 + $0x5] sm:$0x1]
    %v1791 = vsel %vm38, %v1787, 0.0
    %1792 = vadd.xlane.f32.xlu0 %v1791
    %v1793 = vpop.xlane.xlu0 %1792
    %v1794 = vsel %vm38, %v1788, 0.0
    %1795 = vadd.xlane.f32.xlu0 %v1794
    %v1796 = vpop.xlane.xlu0 %1795
    %v1797 = vrcp.pop 32.0
    %v1798 = vmul.f32 %v1793, %v1797
    %v1799 = vmul.f32 %v1796, %v1797
    %v1800 = vsub.f32 %v1787, %v1798
    %v1801 = vsub.f32 %v1788, %v1799
    %v1802 = vmul.f32 %v1800, %v1800
    %v1803 = vmul.f32 %v1801, %v1801
    %v1804 = vsel %vm38, %v1802, 0.0
    %1805 = vadd.xlane.f32.xlu0 %v1804
    %v1806 = vpop.xlane.xlu0 %1805
    %v1807 = vsel %vm38, %v1803, 0.0
    %1808 = vadd.xlane.f32.xlu0 %v1807
    %v1809 = vpop.xlane.xlu0 %1808
    %v1810 = vmul.f32 %v1806, %v1797
    %v1811 = vmul.f32 %v1809, %v1797
    %v1812 = vadd.f32 %v1810, 1e-05
    %v1813 = vadd.f32 %v1811, 1e-05
    %v1814 = vrsqrt.pop %v1812
    %v1815 = vrsqrt.pop %v1813
    %v1816 = vmul.f32 %v1800, %v1814
    %v1817 = vmul.f32 %v1801, %v1815
    %v1818 = vlaneseq
    %v1819 = vshrl.u32 %v1818, 7
    %v1820 = vsub.s32 0, %v1819
    %v1821 = vrot.slane %v1789, %v1820
    %v1822 = vmul.f32 %v1816, %v1821
    %v1823 = vmul.f32 %v1817, %v1821
    %v1824 = vlaneseq
    %v1825 = vshrl.u32 %v1824, 7
    %v1826 = vsub.s32 0, %v1825
    %v1827 = vrot.slane %v1790, %v1826
    %v1828 = vadd.f32 %v1822, %v1827
    %v1829 = vadd.f32 %v1823, %v1827
    %v1830 = vld [vmem:[%s2 + $0x20] sm:$0xf]
    %v1831 = vld [vmem:[%s2 + $0x24] sm:$0xf]
    %v1832 = vld [vmem:[%s2 + $0x28] sm:$0xf]
    %v1833 = vld [vmem:[%s2 + $0x2c] sm:$0xf]
    %v1834 = vld [vmem:[%s2 + $0x30] sm:$0xf]
    %v1835 = vld [vmem:[%s2 + $0x34] sm:$0xf]
    %v1836 = vld [vmem:[%s2 + $0x38] sm:$0xf]
    %v1837 = vld [vmem:[%s2 + $0x3c] sm:$0xf]
    %v1838 = vld [vmem:[%s2 + $0x40] sm:$0xf]
    %v1839 = vld [vmem:[%s2 + $0x44] sm:$0xf]
    %v1840 = vld [vmem:[%s2 + $0x48] sm:$0xf]
    %v1841 = vld [vmem:[%s2 + $0x4c] sm:$0xf]
    %v1842 = vpack.c.bf16 %v1829, %v1828
    %v1843 = vld [vmem:[%s3 + $0x6] sm:$0x1]
    %v1844 = vlaneseq
    %v1845 = vshrl.u32 %v1844, 7
    %v1846 = vsub.s32 0, %v1845
    %v1847 = vrot.slane %v1843, %v1846
    %v1852 = vunpack.c.l.b16 %v1830
    %v1853 = vunpack.c.l.b16 %v1831
    %v1854 = vunpack.c.l.b16 %v1832
    %v1855 = vunpack.c.l.b16 %v1833
    %v1856 = vpack.c.b16 %v1853, %v1852
    %v1857 = vpack.c.b16 %v1855, %v1854
    %v1861 = vsel %vm38, %v1842, 0
    %1863 = vmatprep.subr.bf16.mxu0 0
    %1864 = vmatpush1.bf16.msra.mxu0 0
    %1865 = vmatprep.subr.bf16.mxu0 0
    %1866 = vmatpush1.bf16.msra.mxu0 0
    %1867 = vmatprep.subr.bf16.mxu0 0
    %1868 = vmatpush1.bf16.msra.mxu0 0
    %1869 = vmatprep.subr.bf16.mxu0 0
    %1870 = vmatpush1.bf16.msra.mxu0 0
    %1871 = vmatprep.subr.bf16.mxu0 0
    %1872 = vmatpush1.bf16.msra.mxu0 0
    %1873 = vmatprep.subr.bf16.mxu0 0
    %1874 = vmatpush1.bf16.msra.mxu0 0
    %1875 = vmatprep.subr.bf16.mxu0 0
    %1876 = vmatpush1.bf16.msra.mxu0 %v1857
    %1877 = vmatprep.subr.bf16.mxu0 0
    %1878 = vmatpush1.bf16.msra.mxu0 %v1856
    %1879 = vmatprep.subr.bf16.mxu0 0
    %1880 = vmatpush2.bf16.msra.mxu0 0
    %1881 = vmatprep.subr.bf16.mxu0 0
    %1882 = vmatpush2.bf16.msra.mxu0 0
    %1883 = vmatprep.subr.bf16.mxu0 0
    %1884 = vmatpush2.bf16.msra.mxu0 0
    %1885 = vmatprep.subr.bf16.mxu0 0
    %1886 = vmatpush2.bf16.msra.mxu0 0
    %1887 = vmatprep.subr.bf16.mxu0 0
    %1888 = vmatpush2.bf16.msra.mxu0 0
    %1889 = vmatprep.subr.bf16.mxu0 0
    %1890 = vmatpush2.bf16.msra.mxu0 0
    %1891 = vmatprep.subr.bf16.mxu0 0
    %1892 = vmatpush2.bf16.msra.mxu0 0
    %1893 = vmatprep.subr.bf16.mxu0 0
    %1894 = vmatpush2.bf16.msra.mxu0 0
    %1895 = vmatprep.mubr.bf16.mxu0 0
    %1896 = vmatmul.mubr.bf16.gmra.mxu0 %v1861
    %v1897 = vpop.f32.mrf.mxu0
    %v1898 = vadd.f32 %v1847, %v1897
    %v1899 = vpop.f32.mrf.mxu0
    %v1900 = vpop.f32.mrf.mxu0
    %v1901 = vadd.f32 %v1847, %v1900
    %v1902 = vpop.f32.mrf.mxu0
    %1903 = vdwg.mxu0
    %v1904 = vmax.f32 %v1898, 0.0
    %v1905 = vmax.f32 %v1901, 0.0
    %v1906 = vpack.c.bf16 %v1905, %v1904
    %v1907 = vld [vmem:[%s3 + $0x7] sm:$0x1]
    %v1908 = vlaneseq
    %v1909 = vshrl.u32 %v1908, 7
    %v1910 = vsub.s32 0, %v1909
    %v1911 = vrot.slane %v1907, %v1910
    %v1920 = vunpack.c.l.b16 %v1834
    %v1921 = vunpack.c.l.b16 %v1835
    %v1922 = vunpack.c.l.b16 %v1836
    %v1923 = vunpack.c.l.b16 %v1837
    %v1924 = vunpack.c.l.b16 %v1838
    %v1925 = vunpack.c.l.b16 %v1839
    %v1926 = vunpack.c.l.b16 %v1840
    %v1927 = vunpack.c.l.b16 %v1841
    %v1928 = vpack.c.b16 %v1921, %v1920
    %v1929 = vpack.c.b16 %v1923, %v1922
    %v1930 = vpack.c.b16 %v1925, %v1924
    %v1931 = vpack.c.b16 %v1927, %v1926
    %vm1936 = vcmask 523264
    %v1938 = vsel %vm1936, %v1906, 0
    %1940 = vmatprep.subr.bf16.mxu0 0
    %1941 = vmatpush1.bf16.msra.mxu0 0
    %1942 = vmatprep.subr.bf16.mxu0 0
    %1943 = vmatpush1.bf16.msra.mxu0 0
    %1944 = vmatprep.subr.bf16.mxu0 0
    %1945 = vmatpush1.bf16.msra.mxu0 0
    %1946 = vmatprep.subr.bf16.mxu0 0
    %1947 = vmatpush1.bf16.msra.mxu0 0
    %1948 = vmatprep.subr.bf16.mxu0 0
    %1949 = vmatpush1.bf16.msra.mxu0 %v1931
    %1950 = vmatprep.subr.bf16.mxu0 0
    %1951 = vmatpush1.bf16.msra.mxu0 %v1930
    %1952 = vmatprep.subr.bf16.mxu0 0
    %1953 = vmatpush1.bf16.msra.mxu0 %v1929
    %1954 = vmatprep.subr.bf16.mxu0 0
    %1955 = vmatpush1.bf16.msra.mxu0 %v1928
    %1956 = vmatprep.subr.bf16.mxu0 0
    %1957 = vmatpush2.bf16.msra.mxu0 0
    %1958 = vmatprep.subr.bf16.mxu0 0
    %1959 = vmatpush2.bf16.msra.mxu0 0
    %1960 = vmatprep.subr.bf16.mxu0 0
    %1961 = vmatpush2.bf16.msra.mxu0 0
    %1962 = vmatprep.subr.bf16.mxu0 0
    %1963 = vmatpush2.bf16.msra.mxu0 0
    %1964 = vmatprep.subr.bf16.mxu0 0
    %1965 = vmatpush2.bf16.msra.mxu0 0
    %1966 = vmatprep.subr.bf16.mxu0 0
    %1967 = vmatpush2.bf16.msra.mxu0 0
    %1968 = vmatprep.subr.bf16.mxu0 0
    %1969 = vmatpush2.bf16.msra.mxu0 0
    %1970 = vmatprep.subr.bf16.mxu0 0
    %1971 = vmatpush2.bf16.msra.mxu0 0
    %1972 = vmatprep.mubr.bf16.mxu0 0
    %1973 = vmatmul.mubr.bf16.gmra.mxu0 %v1938
    %v1974 = vpop.f32.mrf.mxu0
    %v1975 = vadd.f32 %v1911, %v1974
    %v1976 = vpop.f32.mrf.mxu0
    %v1977 = vpop.f32.mrf.mxu0
    %v1978 = vadd.f32 %v1911, %v1977
    %v1979 = vpop.f32.mrf.mxu0
    %1980 = vdwg.mxu0
    %v1981 = vadd.f32 %v1828, %v1975
    %v1982 = vadd.f32 %v1829, %v1978
    %v1983 = vld [vmem:[%s3 + $0x8] sm:$0x1]
    %v1984 = vld [vmem:[%s3 + $0x9] sm:$0x1]
    %v1985 = vsel %vm38, %v1981, 0.0
    %1986 = vadd.xlane.f32.xlu0 %v1985
    %v1987 = vpop.xlane.xlu0 %1986
    %v1988 = vsel %vm38, %v1982, 0.0
    %1989 = vadd.xlane.f32.xlu0 %v1988
    %v1990 = vpop.xlane.xlu0 %1989
    %v1991 = vmul.f32 %v1987, %v1797
    %v1992 = vmul.f32 %v1990, %v1797
    %v1993 = vsub.f32 %v1981, %v1991
    %v1994 = vsub.f32 %v1982, %v1992
    %v1995 = vmul.f32 %v1993, %v1993
    %v1996 = vmul.f32 %v1994, %v1994
    %v1997 = vsel %vm38, %v1995, 0.0
    %1998 = vadd.xlane.f32.xlu0 %v1997
    %v1999 = vpop.xlane.xlu0 %1998
    %v2000 = vsel %vm38, %v1996, 0.0
    %2001 = vadd.xlane.f32.xlu0 %v2000
    %v2002 = vpop.xlane.xlu0 %2001
    %v2003 = vmul.f32 %v1999, %v1797
    %v2004 = vmul.f32 %v2002, %v1797
    %v2005 = vadd.f32 %v2003, 1e-05
    %v2006 = vadd.f32 %v2004, 1e-05
    %v2007 = vrsqrt.pop %v2005
    %v2008 = vrsqrt.pop %v2006
    %v2009 = vmul.f32 %v1993, %v2007
    %v2010 = vmul.f32 %v1994, %v2008
    %v2011 = vlaneseq
    %v2012 = vshrl.u32 %v2011, 7
    %v2013 = vsub.s32 0, %v2012
    %v2014 = vrot.slane %v1983, %v2013
    %v2015 = vmul.f32 %v2009, %v2014
    %v2016 = vmul.f32 %v2010, %v2014
    %v2017 = vlaneseq
    %v2018 = vshrl.u32 %v2017, 7
    %v2019 = vsub.s32 0, %v2018
    %v2020 = vrot.slane %v1984, %v2019
    %v2021 = vadd.f32 %v2015, %v2020
    %v2022 = vadd.f32 %v2016, %v2020
    %2023 = vst.msk [vmem:[#allocation2] sm:$0xff] %vm38, %v2021
    %2024 = vst.msk [vmem:[#allocation2 + $0x8] sm:$0xff] %vm38, %v2022
    // Predicated region
    $region18: #{encoder_layer_self.1} parent=1 // pred_check
      _
    $region19: #{encoder_layer_self.1} parent=1 // pred_check_branch
      %2026 = sbr.rel (0) target = $region21
    $region20: #{encoder_layer_self.1} parent=1 // pred_region
      %s2028 = ssub.s32 256, 256
      %2029 = vsyncadd [#allocation3], %s2028
      %s2030 = sshll.u32 [#allocation2], 4
      %s2031 = int_to_ptr.vmem [resolvable:$true] %s2030
      %2036 = dma.vmem_to_hbm [thread:$0]  %s2031, 256, %s4, [#allocation3], 128, 128, 8
    $region21: #{encoder_layer_self.1} parent=1 // pred_fallthru
      _
    // Predicated region
    $region22: #{encoder_layer_self.1} parent=1 // pred_check
      _
    $region23: #{encoder_layer_self.1} parent=1 // pred_check_branch
      %2038 = sbr.rel (0) target = $region25
    $region24: #{encoder_layer_self.1} parent=1 // pred_region
      %2039 = dma.done [#allocation3], 256
    $region25: #{encoder_layer_self.1} parent=1 // pred_fallthru
      _
    %2040 = vsyncpa [#allocation3], 1

</llo_original>
